<compile_context>
chip_gen: v6e
topology: v6e:2x2x1
jax: 0.10.0
libtpu: 0.0.40
codegen_flags: <defaults>
</compile_context>

<pallas_src>
import functools
import math

import jax
import jax.numpy as jnp
from jax.experimental import pallas as pl
from jax.experimental.pallas import tpu as pltpu


# --------------------------------------------------------------------------
# Shared math helpers (pure jnp; used both in-kernel and in the reference)
# --------------------------------------------------------------------------
def _layer_norm(x, gamma, beta, eps=1e-5):
    mean = jnp.mean(x, axis=-1, keepdims=True)
    var = jnp.mean((x - mean) ** 2, axis=-1, keepdims=True)
    return (x - mean) * jax.lax.rsqrt(var + eps) * gamma + beta


def _softmax_lastdim(s):
    # in-kernel softmax: exp on EUP, divide replaced by EUP reciprocal
    s = s - jnp.max(s, axis=-1, keepdims=True)
    p = jnp.exp(s)
    denom = jnp.sum(p, axis=-1, keepdims=True)
    r = pl.reciprocal(denom, approx=True)
    r = r * (2.0 - denom * r)          # one Newton step -> ~exact f32 1/denom
    return p * r


# --------------------------------------------------------------------------
# Fused encoder kernel: grid axis = layer index (sequential / "arbitrary").
# Activation is carried across layers in a VMEM scratch (acc_ref).
# --------------------------------------------------------------------------
def fused_encoder_kernel(n_heads,
                         x_ref, wqkv_ref, bqkv_ref, wo_ref, w1_ref, b1_ref,
                         w2_ref, pvec_ref, fin_ref,
                         y_ref, attn_ref,
                         acc_ref):
    layer = pl.program_id(0)
    B, L, D = acc_ref.shape
    H = n_heads
    dh = D // H
    scale = 1.0 / math.sqrt(dh)

    # ---- load input activation into the resident VMEM accumulator (once) ----
    @pl.when(layer == 0)
    def _():
        acc_ref[...] = x_ref[...].astype(jnp.float32)

    xt = acc_ref[...].reshape(B * L, D)                     # (B*L, D)

    # ---- fused QKV projection: one (B*L, D) @ (D, 3D) matmul ----
    qkv = jnp.dot(xt, wqkv_ref[0],
                  preferred_element_type=jnp.float32) + bqkv_ref[0, 0]
    qkv3 = qkv.reshape(B, L, 3 * D)                         # (B, L, 3D)

    # ---- multi-head attention: batched (over B) einsums per head ----
    a_heads = []
    o_heads = []
    for h in range(H):
        qh = qkv3[:, :, h * dh:(h + 1) * dh]                # (B, L, dh)
        kh = qkv3[:, :, D + h * dh:D + (h + 1) * dh]
        vh = qkv3[:, :, 2 * D + h * dh:2 * D + (h + 1) * dh]
        s = jnp.einsum('bld,bsd->bls', qh, kh,
                       preferred_element_type=jnp.float32) * scale   # (B, L, L)
        a = _softmax_lastdim(s)
        a_heads.append(a)
        o_heads.append(jnp.einsum('bls,bsd->bld', a, vh,
                                  preferred_element_type=jnp.float32))

    # single attention-map store per layer (B*H, L, L)
    a_all = jnp.stack(a_heads, axis=1).reshape(B * H, L, L)
    attn_ref[0] = a_all.astype(attn_ref.dtype)

    o = jnp.concatenate(o_heads, axis=-1).reshape(B * L, D)          # (B*L, D)

    # ---- small per-layer params packed in one (6, D) block ----
    pvec = pvec_ref[0]
    bo, b2 = pvec[0], pvec[1]
    g1, be1 = pvec[2], pvec[3]
    g2, be2 = pvec[4], pvec[5]

    # ---- output projection + residual + LayerNorm1 (dropout == identity) ----
    new_x = jnp.dot(o, wo_ref[0], preferred_element_type=jnp.float32) + bo
    x1 = _layer_norm(xt + new_x, g1, be1)

    # ---- FFN (Conv1d k=1 == pointwise linear), relu activation ----
    ff = jnp.dot(x1, w1_ref[0], preferred_element_type=jnp.float32) + b1_ref[0, 0]
    ff = jnp.maximum(ff, 0.0)
    ff = jnp.dot(ff, w2_ref[0], preferred_element_type=jnp.float32) + b2

    # ---- residual + LayerNorm2, carried to the next layer ----
    x2 = _layer_norm(x1 + ff, g2, be2)
    acc_ref[...] = x2.reshape(B, L, D)

    # ---- final Encoder.norm only on the last layer ----
    @pl.when(layer == pl.num_programs(0) - 1)
    def _():
        y_ref[...] = _layer_norm(x2, fin_ref[0], fin_ref[1]
                                 ).reshape(B, L, D).astype(y_ref.dtype)


# --------------------------------------------------------------------------
# Wrapper: packs stacked per-layer params and launches one pallas_call.
# --------------------------------------------------------------------------
def encoder_forward(x, params, norm, n_heads):
    B, L, D = x.shape
    N = params["wq"].shape[0]
    F = params["w1"].shape[-1]
    H = n_heads

    # pack weights (host/XLA side, once)
    wqkv = jnp.concatenate([params["wq"], params["wk"], params["wv"]], axis=-1)  # (N, D, 3D)
    bqkv = jnp.concatenate([params["bq"], params["bk"], params["bv"]], axis=-1)[:, None, :]  # (N,1,3D)
    pvec = jnp.stack([params["bo"], params["b2"], params["g1"], params["be1"],
                      params["g2"], params["be2"]], axis=1)                      # (N, 6, D)
    b1 = params["b1"][:, None, :]                                                # (N, 1, F)
    fin = jnp.stack([norm["g"], norm["b"]], axis=0)                              # (2, D)

    in_specs = [
        pl.BlockSpec((B, L, D), lambda l: (0, 0, 0)),            # x (resident)
        pl.BlockSpec((1, D, 3 * D), lambda l: (l, 0, 0)),        # Wqkv
        pl.BlockSpec((1, 1, 3 * D), lambda l: (l, 0, 0)),        # bqkv
        pl.BlockSpec((1, D, D), lambda l: (l, 0, 0)),            # Wo
        pl.BlockSpec((1, D, F), lambda l: (l, 0, 0)),            # conv1 weight
        pl.BlockSpec((1, 1, F), lambda l: (l, 0, 0)),            # conv1 bias
        pl.BlockSpec((1, F, D), lambda l: (l, 0, 0)),            # conv2 weight
        pl.BlockSpec((1, 6, D), lambda l: (l, 0, 0)),            # packed small params
        pl.BlockSpec((2, D), lambda l: (0, 0)),                  # final LN (resident)
    ]
    out_specs = [
        pl.BlockSpec((B, L, D), lambda l: (0, 0, 0)),            # y (resident, write last)
        pl.BlockSpec((1, B * H, L, L), lambda l: (l, 0, 0, 0)),  # attn per layer
    ]

    y, attn = pl.pallas_call(
        functools.partial(fused_encoder_kernel, H),
        out_shape=(jax.ShapeDtypeStruct((B, L, D), jnp.float32),
                   jax.ShapeDtypeStruct((N, B * H, L, L), jnp.float32)),
        grid=(N,),
        in_specs=in_specs,
        out_specs=out_specs,
        scratch_shapes=[pltpu.VMEM((B, L, D), jnp.float32)],
        compiler_params=pltpu.CompilerParams(
            dimension_semantics=("arbitrary",)),      # layer axis is sequential
    )(x, wqkv, bqkv, params["wo"], params["w1"], b1, params["w2"], pvec, fin)

    attns = [attn[i].reshape(B, H, L, L) for i in range(N)]
    return y, attns


# --------------------------------------------------------------------------
# Pure-JAX reference (mirrors the PyTorch module in eval mode)
# --------------------------------------------------------------------------
def encoder_reference(x, params, norm, n_heads):
    N = params["wq"].shape[0]
    B, L, D = x.shape
    dh = D // n_heads
    attns = []
    for i in range(N):
        q = x @ params["wq"][i] + params["bq"][i]
        k = x @ params["wk"][i] + params["bk"][i]
        v = x @ params["wv"][i] + params["bv"][i]
        q = q.reshape(B, L, n_heads, dh)
        k = k.reshape(B, L, n_heads, dh)
        v = v.reshape(B, L, n_heads, dh)
        s = jnp.einsum("blhe,bshe->bhls", q, k) / math.sqrt(dh)
        a = jax.nn.softmax(s, axis=-1)
        attns.append(a)
        o = jnp.einsum("bhls,bshd->blhd", a, v).reshape(B, L, D)
        new_x = o @ params["wo"][i] + params["bo"][i]
        x1 = _layer_norm(x + new_x, params["g1"][i], params["be1"][i])
        ff = jnp.maximum(x1 @ params["w1"][i] + params["b1"][i], 0.0)
        ff = ff @ params["w2"][i] + params["b2"][i]
        x = _layer_norm(x1 + ff, params["g2"][i], params["be2"][i])
    x = _layer_norm(x, norm["g"], norm["b"])
    return x, attns


# --------------------------------------------------------------------------
# Deterministic parameter init (stacked along a leading layer axis)
# --------------------------------------------------------------------------
def init_params(key, n_layers, D, F):
    ks = jax.random.split(key, 8)

    def w(k, shape):
        return 0.05 * jax.random.normal(k, shape, jnp.float32)

    params = dict(
        wq=w(ks[0], (n_layers, D, D)),
        bq=0.01 * jax.random.normal(ks[1], (n_layers, D), jnp.float32),
        wk=w(ks[2], (n_layers, D, D)),
        bk=jnp.zeros((n_layers, D), jnp.float32),
        wv=w(ks[3], (n_layers, D, D)),
        bv=jnp.zeros((n_layers, D), jnp.float32),
        wo=w(ks[4], (n_layers, D, D)),
        bo=jnp.zeros((n_layers, D), jnp.float32),
        w1=w(ks[5], (n_layers, D, F)),
        b1=0.01 * jax.random.normal(ks[6], (n_layers, F), jnp.float32),
        w2=w(ks[7], (n_layers, F, D)),
        b2=jnp.zeros((n_layers, D), jnp.float32),
        g1=jnp.ones((n_layers, D), jnp.float32),
        be1=jnp.zeros((n_layers, D), jnp.float32),
        g2=jnp.ones((n_layers, D), jnp.float32),
        be2=jnp.zeros((n_layers, D), jnp.float32),
    )
    norm = dict(g=jnp.ones((D,), jnp.float32), b=jnp.zeros((D,), jnp.float32))
    return params, norm


if __name__ == "__main__":
    B, L, D, H, F = 2, 8, 32, 4, 64
    N_LAYERS = 2

    key = jax.random.PRNGKey(0)
    x = jax.random.normal(jax.random.fold_in(key, 123), (B, L, D), jnp.float32)
    params, norm = init_params(key, N_LAYERS, D, F)

    out, attns = encoder_forward(x, params, norm, H)
    out = jax.block_until_ready(out)
    attns = [jax.block_until_ready(a) for a in attns]

    ref_out, ref_attns = encoder_reference(x, params, norm, H)
    assert out.shape == (B, L, D)
    assert all(a.shape == (B, H, L, L) for a in attns)
    assert jnp.allclose(out, ref_out, rtol=1e-4, atol=1e-4)
    for a, ra in zip(attns, ref_attns):
        assert jnp.allclose(a, ra, rtol=1e-4, atol=1e-4)

    print("KERNEL_OK")
</pallas_src>

<mosaic_0001>
module attributes {stable_mosaic.version = 11 : i64} {
  func.func @fused_encoder_kernel(%arg0: i32, %arg1: memref<2x8x32xf32, #tpu.memory_space<vmem>>, %arg2: memref<1x32x96xf32, #tpu.memory_space<vmem>>, %arg3: memref<1x1x96xf32, #tpu.memory_space<vmem>>, %arg4: memref<1x32x32xf32, #tpu.memory_space<vmem>>, %arg5: memref<1x32x64xf32, #tpu.memory_space<vmem>>, %arg6: memref<1x1x64xf32, #tpu.memory_space<vmem>>, %arg7: memref<1x64x32xf32, #tpu.memory_space<vmem>>, %arg8: memref<1x6x32xf32, #tpu.memory_space<vmem>>, %arg9: memref<2x32xf32, #tpu.memory_space<vmem>>, %arg10: memref<2x8x32xf32, #tpu.memory_space<vmem>>, %arg11: memref<1x8x8x8xf32, #tpu.memory_space<vmem>>, %arg12: memref<2x8x32xf32, #tpu.memory_space<vmem>>) attributes {dimension_semantics = [#tpu.dimension_semantics<arbitrary>], iteration_bounds = array<i64: 2>, scalar_prefetch = 0 : i64, scratch_operands = 1 : i64, tpu.core_type = #tpu.core_type<tc>, window_params = [{pipeline_mode = #tpu.pipeline_mode<synchronous>, transform_indices = @transform_0, window_bounds = array<i64: 2, 8, 32>}, {transform_indices = @transform_1, window_bounds = array<i64: 1, 32, 96>}, {transform_indices = @transform_2, window_bounds = array<i64: 1, 1, 96>}, {transform_indices = @transform_3, window_bounds = array<i64: 1, 32, 32>}, {transform_indices = @transform_4, window_bounds = array<i64: 1, 32, 64>}, {transform_indices = @transform_5, window_bounds = array<i64: 1, 1, 64>}, {transform_indices = @transform_6, window_bounds = array<i64: 1, 64, 32>}, {transform_indices = @transform_7, window_bounds = array<i64: 1, 6, 32>}, {pipeline_mode = #tpu.pipeline_mode<synchronous>, transform_indices = @transform_8, window_bounds = array<i64: 2, 32>}, {pipeline_mode = #tpu.pipeline_mode<synchronous>, transform_indices = @transform_9, window_bounds = array<i64: 2, 8, 32>}, {transform_indices = @transform_10, window_bounds = array<i64: 1, 8, 8, 8>}]} {
    %c0_i32 = arith.constant 0 : i32
    %0 = arith.cmpi eq, %arg0, %c0_i32 : i32
    %1 = arith.extui %0 : i1 to i32
    %c0_i32_0 = arith.constant 0 : i32
    %2 = arith.cmpi ne, %1, %c0_i32_0 : i32
    scf.if %2 {
      %c0_70 = arith.constant 0 : index
      %c0_71 = arith.constant 0 : index
      %c0_72 = arith.constant 0 : index
      %200 = vector.load %arg1[%c0_70, %c0_71, %c0_72] : memref<2x8x32xf32, #tpu.memory_space<vmem>>, vector<2x8x32xf32>
      %c0_73 = arith.constant 0 : index
      %c0_74 = arith.constant 0 : index
      %c0_75 = arith.constant 0 : index
      %201 = vector.load %arg12[%c0_73, %c0_74, %c0_75] : memref<2x8x32xf32, #tpu.memory_space<vmem>>, vector<2x8x32xf32>
      tpu.vector_store %arg12[%c0_73, %c0_74, %c0_75], %200 {strides = array<i32>} : memref<2x8x32xf32, #tpu.memory_space<vmem>>, vector<2x8x32xf32>,
    } else {
    }
    %c0 = arith.constant 0 : index
    %c0_1 = arith.constant 0 : index
    %c0_2 = arith.constant 0 : index
    %3 = vector.load %arg12[%c0, %c0_1, %c0_2] : memref<2x8x32xf32, #tpu.memory_space<vmem>>, vector<2x8x32xf32>
    %4 = vector.shape_cast %3 : vector<2x8x32xf32> to vector<16x32xf32>
    %c0_3 = arith.constant 0 : index
    %c0_4 = arith.constant 0 : index
    %c0_5 = arith.constant 0 : index
    %5 = vector.load %arg2[%c0_3, %c0_4, %c0_5] : memref<1x32x96xf32, #tpu.memory_space<vmem>>, vector<1x32x96xf32>
    %6 = vector.shape_cast %5 : vector<1x32x96xf32> to vector<32x96xf32>
    %cst = arith.constant dense<0.000000e+00> : vector<16x96xf32>
    %7 = tpu.matmul %4, %6, %cst {dimension_numbers = #tpu.dot_dimension_numbers<[1], [0], [0], [1], [0, 0, 1, 1], [], []>} : vector<16x32xf32>, vector<32x96xf32>, vector<16x96xf32> -> vector<16x96xf32>
    %c0_6 = arith.constant 0 : index
    %c0_7 = arith.constant 0 : index
    %c0_8 = arith.constant 0 : index
    %8 = vector.load %arg3[%c0_6, %c0_7, %c0_8] : memref<1x1x96xf32, #tpu.memory_space<vmem>>, vector<1x1x96xf32>
    %9 = vector.shape_cast %8 : vector<1x1x96xf32> to vector<96xf32>
    %10 = vector.shape_cast %9 : vector<96xf32> to vector<1x96xf32>
    %11 = vector.broadcast %10 : vector<1x96xf32> to vector<16x96xf32>
    %12 = arith.addf %7, %11 : vector<16x96xf32>
    %13 = vector.shape_cast %12 : vector<16x96xf32> to vector<2x8x96xf32>
    %14 = vector.extract_strided_slice %13 {offsets = [0, 0, 0], sizes = [2, 8, 8], strides = [1, 1, 1]} : vector<2x8x96xf32> to vector<2x8x8xf32>
    %15 = vector.extract_strided_slice %13 {offsets = [0, 0, 32], sizes = [2, 8, 8], strides = [1, 1, 1]} : vector<2x8x96xf32> to vector<2x8x8xf32>
    %16 = vector.extract_strided_slice %13 {offsets = [0, 0, 64], sizes = [2, 8, 8], strides = [1, 1, 1]} : vector<2x8x96xf32> to vector<2x8x8xf32>
    "tpu.trace_start"() <{level = 10 : i32, message = "bld,bsd->bls"}> : () -> ()
    %cst_9 = arith.constant dense<0.000000e+00> : vector<2x8x8xf32>
    %17 = tpu.matmul %14, %15, %cst_9 {dimension_numbers = #tpu.dot_dimension_numbers<[2], [2], [1], [1], [0, 0, 0, 1, 1, 1], [0], [0]>} : vector<2x8x8xf32>, vector<2x8x8xf32>, vector<2x8x8xf32> -> vector<2x8x8xf32>
    "tpu.trace_stop"() : () -> ()
    %cst_10 = arith.constant 0.353553385 : f32
    %18 = vector.broadcast %cst_10 : f32 to vector<2x8x8xf32>
    %19 = arith.mulf %17, %18 : vector<2x8x8xf32>
    %cst_11 = arith.constant dense<0xFF800000> : vector<2x8xf32>
    %20 = vector.multi_reduction <maximumf>, %19, %cst_11 [2] : vector<2x8x8xf32> to vector<2x8xf32>
    %21 = vector.shape_cast %20 : vector<2x8xf32> to vector<2x8x1xf32>
    %22 = vector.broadcast %21 : vector<2x8x1xf32> to vector<2x8x8xf32>
    %23 = arith.subf %19, %22 : vector<2x8x8xf32>
    %24 = math.exp %23 : vector<2x8x8xf32>
    %cst_12 = arith.constant dense<0.000000e+00> : vector<2x8xf32>
    %25 = vector.multi_reduction <add>, %24, %cst_12 [2] : vector<2x8x8xf32> to vector<2x8xf32>
    %26 = vector.shape_cast %25 : vector<2x8xf32> to vector<2x8x1xf32>
    %27 = tpu.reciprocal %26 {approx = true} : vector<2x8x1xf32> -> vector<2x8x1xf32>
    %28 = arith.mulf %26, %27 : vector<2x8x1xf32>
    %cst_13 = arith.constant 2.000000e+00 : f32
    %29 = vector.broadcast %cst_13 : f32 to vector<2x8x1xf32>
    %30 = arith.subf %29, %28 : vector<2x8x1xf32>
    %31 = arith.mulf %27, %30 : vector<2x8x1xf32>
    %32 = vector.broadcast %31 : vector<2x8x1xf32> to vector<2x8x8xf32>
    %33 = arith.mulf %24, %32 : vector<2x8x8xf32>
    "tpu.trace_start"() <{level = 10 : i32, message = "bls,bsd->bld"}> : () -> ()
    %cst_14 = arith.constant dense<0.000000e+00> : vector<2x8x8xf32>
    %34 = tpu.matmul %33, %16, %cst_14 {dimension_numbers = #tpu.dot_dimension_numbers<[2], [1], [1], [2], [0, 0, 0, 1, 1, 2], [0], [0]>} : vector<2x8x8xf32>, vector<2x8x8xf32>, vector<2x8x8xf32> -> vector<2x8x8xf32>
    "tpu.trace_stop"() : () -> ()
    %35 = vector.extract_strided_slice %13 {offsets = [0, 0, 8], sizes = [2, 8, 8], strides = [1, 1, 1]} : vector<2x8x96xf32> to vector<2x8x8xf32>
    %36 = vector.extract_strided_slice %13 {offsets = [0, 0, 40], sizes = [2, 8, 8], strides = [1, 1, 1]} : vector<2x8x96xf32> to vector<2x8x8xf32>
    %37 = vector.extract_strided_slice %13 {offsets = [0, 0, 72], sizes = [2, 8, 8], strides = [1, 1, 1]} : vector<2x8x96xf32> to vector<2x8x8xf32>
    "tpu.trace_start"() <{level = 10 : i32, message = "bld,bsd->bls"}> : () -> ()
    %cst_15 = arith.constant dense<0.000000e+00> : vector<2x8x8xf32>
    %38 = tpu.matmul %35, %36, %cst_15 {dimension_numbers = #tpu.dot_dimension_numbers<[2], [2], [1], [1], [0, 0, 0, 1, 1, 1], [0], [0]>} : vector<2x8x8xf32>, vector<2x8x8xf32>, vector<2x8x8xf32> -> vector<2x8x8xf32>
    "tpu.trace_stop"() : () -> ()
    %cst_16 = arith.constant 0.353553385 : f32
    %39 = vector.broadcast %cst_16 : f32 to vector<2x8x8xf32>
    %40 = arith.mulf %38, %39 : vector<2x8x8xf32>
    %cst_17 = arith.constant dense<0xFF800000> : vector<2x8xf32>
    %41 = vector.multi_reduction <maximumf>, %40, %cst_17 [2] : vector<2x8x8xf32> to vector<2x8xf32>
    %42 = vector.shape_cast %41 : vector<2x8xf32> to vector<2x8x1xf32>
    %43 = vector.broadcast %42 : vector<2x8x1xf32> to vector<2x8x8xf32>
    %44 = arith.subf %40, %43 : vector<2x8x8xf32>
    %45 = math.exp %44 : vector<2x8x8xf32>
    %cst_18 = arith.constant dense<0.000000e+00> : vector<2x8xf32>
    %46 = vector.multi_reduction <add>, %45, %cst_18 [2] : vector<2x8x8xf32> to vector<2x8xf32>
    %47 = vector.shape_cast %46 : vector<2x8xf32> to vector<2x8x1xf32>
    %48 = tpu.reciprocal %47 {approx = true} : vector<2x8x1xf32> -> vector<2x8x1xf32>
    %49 = arith.mulf %47, %48 : vector<2x8x1xf32>
    %cst_19 = arith.constant 2.000000e+00 : f32
    %50 = vector.broadcast %cst_19 : f32 to vector<2x8x1xf32>
    %51 = arith.subf %50, %49 : vector<2x8x1xf32>
    %52 = arith.mulf %48, %51 : vector<2x8x1xf32>
    %53 = vector.broadcast %52 : vector<2x8x1xf32> to vector<2x8x8xf32>
    %54 = arith.mulf %45, %53 : vector<2x8x8xf32>
    "tpu.trace_start"() <{level = 10 : i32, message = "bls,bsd->bld"}> : () -> ()
    %cst_20 = arith.constant dense<0.000000e+00> : vector<2x8x8xf32>
    %55 = tpu.matmul %54, %37, %cst_20 {dimension_numbers = #tpu.dot_dimension_numbers<[2], [1], [1], [2], [0, 0, 0, 1, 1, 2], [0], [0]>} : vector<2x8x8xf32>, vector<2x8x8xf32>, vector<2x8x8xf32> -> vector<2x8x8xf32>
    "tpu.trace_stop"() : () -> ()
    %56 = vector.extract_strided_slice %13 {offsets = [0, 0, 16], sizes = [2, 8, 8], strides = [1, 1, 1]} : vector<2x8x96xf32> to vector<2x8x8xf32>
    %57 = vector.extract_strided_slice %13 {offsets = [0, 0, 48], sizes = [2, 8, 8], strides = [1, 1, 1]} : vector<2x8x96xf32> to vector<2x8x8xf32>
    %58 = vector.extract_strided_slice %13 {offsets = [0, 0, 80], sizes = [2, 8, 8], strides = [1, 1, 1]} : vector<2x8x96xf32> to vector<2x8x8xf32>
    "tpu.trace_start"() <{level = 10 : i32, message = "bld,bsd->bls"}> : () -> ()
    %cst_21 = arith.constant dense<0.000000e+00> : vector<2x8x8xf32>
    %59 = tpu.matmul %56, %57, %cst_21 {dimension_numbers = #tpu.dot_dimension_numbers<[2], [2], [1], [1], [0, 0, 0, 1, 1, 1], [0], [0]>} : vector<2x8x8xf32>, vector<2x8x8xf32>, vector<2x8x8xf32> -> vector<2x8x8xf32>
    "tpu.trace_stop"() : () -> ()
    %cst_22 = arith.constant 0.353553385 : f32
    %60 = vector.broadcast %cst_22 : f32 to vector<2x8x8xf32>
    %61 = arith.mulf %59, %60 : vector<2x8x8xf32>
    %cst_23 = arith.constant dense<0xFF800000> : vector<2x8xf32>
    %62 = vector.multi_reduction <maximumf>, %61, %cst_23 [2] : vector<2x8x8xf32> to vector<2x8xf32>
    %63 = vector.shape_cast %62 : vector<2x8xf32> to vector<2x8x1xf32>
    %64 = vector.broadcast %63 : vector<2x8x1xf32> to vector<2x8x8xf32>
    %65 = arith.subf %61, %64 : vector<2x8x8xf32>
    %66 = math.exp %65 : vector<2x8x8xf32>
    %cst_24 = arith.constant dense<0.000000e+00> : vector<2x8xf32>
    %67 = vector.multi_reduction <add>, %66, %cst_24 [2] : vector<2x8x8xf32> to vector<2x8xf32>
    %68 = vector.shape_cast %67 : vector<2x8xf32> to vector<2x8x1xf32>
    %69 = tpu.reciprocal %68 {approx = true} : vector<2x8x1xf32> -> vector<2x8x1xf32>
    %70 = arith.mulf %68, %69 : vector<2x8x1xf32>
    %cst_25 = arith.constant 2.000000e+00 : f32
    %71 = vector.broadcast %cst_25 : f32 to vector<2x8x1xf32>
    %72 = arith.subf %71, %70 : vector<2x8x1xf32>
    %73 = arith.mulf %69, %72 : vector<2x8x1xf32>
    %74 = vector.broadcast %73 : vector<2x8x1xf32> to vector<2x8x8xf32>
    %75 = arith.mulf %66, %74 : vector<2x8x8xf32>
    "tpu.trace_start"() <{level = 10 : i32, message = "bls,bsd->bld"}> : () -> ()
    %cst_26 = arith.constant dense<0.000000e+00> : vector<2x8x8xf32>
    %76 = tpu.matmul %75, %58, %cst_26 {dimension_numbers = #tpu.dot_dimension_numbers<[2], [1], [1], [2], [0, 0, 0, 1, 1, 2], [0], [0]>} : vector<2x8x8xf32>, vector<2x8x8xf32>, vector<2x8x8xf32> -> vector<2x8x8xf32>
    "tpu.trace_stop"() : () -> ()
    %77 = vector.extract_strided_slice %13 {offsets = [0, 0, 24], sizes = [2, 8, 8], strides = [1, 1, 1]} : vector<2x8x96xf32> to vector<2x8x8xf32>
    %78 = vector.extract_strided_slice %13 {offsets = [0, 0, 56], sizes = [2, 8, 8], strides = [1, 1, 1]} : vector<2x8x96xf32> to vector<2x8x8xf32>
    %79 = vector.extract_strided_slice %13 {offsets = [0, 0, 88], sizes = [2, 8, 8], strides = [1, 1, 1]} : vector<2x8x96xf32> to vector<2x8x8xf32>
    "tpu.trace_start"() <{level = 10 : i32, message = "bld,bsd->bls"}> : () -> ()
    %cst_27 = arith.constant dense<0.000000e+00> : vector<2x8x8xf32>
    %80 = tpu.matmul %77, %78, %cst_27 {dimension_numbers = #tpu.dot_dimension_numbers<[2], [2], [1], [1], [0, 0, 0, 1, 1, 1], [0], [0]>} : vector<2x8x8xf32>, vector<2x8x8xf32>, vector<2x8x8xf32> -> vector<2x8x8xf32>
    "tpu.trace_stop"() : () -> ()
    %cst_28 = arith.constant 0.353553385 : f32
    %81 = vector.broadcast %cst_28 : f32 to vector<2x8x8xf32>
    %82 = arith.mulf %80, %81 : vector<2x8x8xf32>
    %cst_29 = arith.constant dense<0xFF800000> : vector<2x8xf32>
    %83 = vector.multi_reduction <maximumf>, %82, %cst_29 [2] : vector<2x8x8xf32> to vector<2x8xf32>
    %84 = vector.shape_cast %83 : vector<2x8xf32> to vector<2x8x1xf32>
    %85 = vector.broadcast %84 : vector<2x8x1xf32> to vector<2x8x8xf32>
    %86 = arith.subf %82, %85 : vector<2x8x8xf32>
    %87 = math.exp %86 : vector<2x8x8xf32>
    %cst_30 = arith.constant dense<0.000000e+00> : vector<2x8xf32>
    %88 = vector.multi_reduction <add>, %87, %cst_30 [2] : vector<2x8x8xf32> to vector<2x8xf32>
    %89 = vector.shape_cast %88 : vector<2x8xf32> to vector<2x8x1xf32>
    %90 = tpu.reciprocal %89 {approx = true} : vector<2x8x1xf32> -> vector<2x8x1xf32>
    %91 = arith.mulf %89, %90 : vector<2x8x1xf32>
    %cst_31 = arith.constant 2.000000e+00 : f32
    %92 = vector.broadcast %cst_31 : f32 to vector<2x8x1xf32>
    %93 = arith.subf %92, %91 : vector<2x8x1xf32>
    %94 = arith.mulf %90, %93 : vector<2x8x1xf32>
    %95 = vector.broadcast %94 : vector<2x8x1xf32> to vector<2x8x8xf32>
    %96 = arith.mulf %87, %95 : vector<2x8x8xf32>
    "tpu.trace_start"() <{level = 10 : i32, message = "bls,bsd->bld"}> : () -> ()
    %cst_32 = arith.constant dense<0.000000e+00> : vector<2x8x8xf32>
    %97 = tpu.matmul %96, %79, %cst_32 {dimension_numbers = #tpu.dot_dimension_numbers<[2], [1], [1], [2], [0, 0, 0, 1, 1, 2], [0], [0]>} : vector<2x8x8xf32>, vector<2x8x8xf32>, vector<2x8x8xf32> -> vector<2x8x8xf32>
    "tpu.trace_stop"() : () -> ()
    %98 = vector.shape_cast %33 : vector<2x8x8xf32> to vector<2x1x8x8xf32>
    %99 = vector.shape_cast %54 : vector<2x8x8xf32> to vector<2x1x8x8xf32>
    %100 = vector.shape_cast %75 : vector<2x8x8xf32> to vector<2x1x8x8xf32>
    %101 = vector.shape_cast %96 : vector<2x8x8xf32> to vector<2x1x8x8xf32>
    %102 = tpu.concatenate %98, %99, %100, %101 in 1 : vector<2x1x8x8xf32>, vector<2x1x8x8xf32>, vector<2x1x8x8xf32>, vector<2x1x8x8xf32> -> vector<2x4x8x8xf32>
    %103 = vector.shape_cast %102 : vector<2x4x8x8xf32> to vector<8x8x8xf32>
    %c0_33 = arith.constant 0 : index
    %c0_34 = arith.constant 0 : index
    %c0_35 = arith.constant 0 : index
    %c0_36 = arith.constant 0 : index
    %104 = vector.load %arg11[%c0_33, %c0_34, %c0_35, %c0_36] : memref<1x8x8x8xf32, #tpu.memory_space<vmem>>, vector<1x8x8x8xf32>
    %105 = vector.shape_cast %104 : vector<1x8x8x8xf32> to vector<8x8x8xf32>
    %106 = vector.shape_cast %103 : vector<8x8x8xf32> to vector<1x8x8x8xf32>
    tpu.vector_store %arg11[%c0_33, %c0_34, %c0_35, %c0_36], %106 {strides = array<i32>} : memref<1x8x8x8xf32, #tpu.memory_space<vmem>>, vector<1x8x8x8xf32>,
    %107 = tpu.concatenate %34, %55, %76, %97 in 2 : vector<2x8x8xf32>, vector<2x8x8xf32>, vector<2x8x8xf32>, vector<2x8x8xf32> -> vector<2x8x32xf32>
    %108 = vector.shape_cast %107 : vector<2x8x32xf32> to vector<16x32xf32>
    %c0_37 = arith.constant 0 : index
    %c0_38 = arith.constant 0 : index
    %c0_39 = arith.constant 0 : index
    %109 = vector.load %arg8[%c0_37, %c0_38, %c0_39] : memref<1x6x32xf32, #tpu.memory_space<vmem>>, vector<1x6x32xf32>
    %110 = vector.shape_cast %109 : vector<1x6x32xf32> to vector<6x32xf32>
    %111 = vector.extract_strided_slice %110 {offsets = [0, 0], sizes = [1, 32], strides = [1, 1]} : vector<6x32xf32> to vector<1x32xf32>
    %112 = vector.shape_cast %111 : vector<1x32xf32> to vector<32xf32>
    %113 = vector.extract_strided_slice %110 {offsets = [1, 0], sizes = [1, 32], strides = [1, 1]} : vector<6x32xf32> to vector<1x32xf32>
    %114 = vector.shape_cast %113 : vector<1x32xf32> to vector<32xf32>
    %115 = vector.extract_strided_slice %110 {offsets = [2, 0], sizes = [1, 32], strides = [1, 1]} : vector<6x32xf32> to vector<1x32xf32>
    %116 = vector.shape_cast %115 : vector<1x32xf32> to vector<32xf32>
    %117 = vector.extract_strided_slice %110 {offsets = [3, 0], sizes = [1, 32], strides = [1, 1]} : vector<6x32xf32> to vector<1x32xf32>
    %118 = vector.shape_cast %117 : vector<1x32xf32> to vector<32xf32>
    %119 = vector.extract_strided_slice %110 {offsets = [4, 0], sizes = [1, 32], strides = [1, 1]} : vector<6x32xf32> to vector<1x32xf32>
    %120 = vector.shape_cast %119 : vector<1x32xf32> to vector<32xf32>
    %121 = vector.extract_strided_slice %110 {offsets = [5, 0], sizes = [1, 32], strides = [1, 1]} : vector<6x32xf32> to vector<1x32xf32>
    %122 = vector.shape_cast %121 : vector<1x32xf32> to vector<32xf32>
    %c0_40 = arith.constant 0 : index
    %c0_41 = arith.constant 0 : index
    %c0_42 = arith.constant 0 : index
    %123 = vector.load %arg4[%c0_40, %c0_41, %c0_42] : memref<1x32x32xf32, #tpu.memory_space<vmem>>, vector<1x32x32xf32>
    %124 = vector.shape_cast %123 : vector<1x32x32xf32> to vector<32x32xf32>
    %cst_43 = arith.constant dense<0.000000e+00> : vector<16x32xf32>
    %125 = tpu.matmul %108, %124, %cst_43 {dimension_numbers = #tpu.dot_dimension_numbers<[1], [0], [0], [1], [0, 0, 1, 1], [], []>} : vector<16x32xf32>, vector<32x32xf32>, vector<16x32xf32> -> vector<16x32xf32>
    %126 = vector.shape_cast %112 : vector<32xf32> to vector<1x32xf32>
    %127 = vector.broadcast %126 : vector<1x32xf32> to vector<16x32xf32>
    %128 = arith.addf %125, %127 : vector<16x32xf32>
    %129 = arith.addf %4, %128 : vector<16x32xf32>
    %cst_44 = arith.constant dense<0.000000e+00> : vector<16xf32>
    %130 = vector.multi_reduction <add>, %129, %cst_44 [1] : vector<16x32xf32> to vector<16xf32>
    %131 = vector.shape_cast %130 : vector<16xf32> to vector<16x1xf32>
    %cst_45 = arith.constant 3.200000e+01 : f32
    %132 = vector.broadcast %cst_45 : f32 to vector<16x1xf32>
    %133 = arith.divf %131, %132 : vector<16x1xf32>
    %134 = vector.broadcast %133 : vector<16x1xf32> to vector<16x32xf32>
    %135 = arith.subf %129, %134 : vector<16x32xf32>
    %136 = arith.mulf %135, %135 : vector<16x32xf32>
    %cst_46 = arith.constant dense<0.000000e+00> : vector<16xf32>
    %137 = vector.multi_reduction <add>, %136, %cst_46 [1] : vector<16x32xf32> to vector<16xf32>
    %138 = vector.shape_cast %137 : vector<16xf32> to vector<16x1xf32>
    %cst_47 = arith.constant 3.200000e+01 : f32
    %139 = vector.broadcast %cst_47 : f32 to vector<16x1xf32>
    %140 = arith.divf %138, %139 : vector<16x1xf32>
    %141 = vector.broadcast %133 : vector<16x1xf32> to vector<16x32xf32>
    %142 = arith.subf %129, %141 : vector<16x32xf32>
    %cst_48 = arith.constant 9.99999974E-6 : f32
    %143 = vector.broadcast %cst_48 : f32 to vector<16x1xf32>
    %144 = arith.addf %140, %143 : vector<16x1xf32>
    %145 = math.rsqrt %144 : vector<16x1xf32>
    %146 = vector.broadcast %145 : vector<16x1xf32> to vector<16x32xf32>
    %147 = arith.mulf %142, %146 : vector<16x32xf32>
    %148 = vector.shape_cast %116 : vector<32xf32> to vector<1x32xf32>
    %149 = vector.broadcast %148 : vector<1x32xf32> to vector<16x32xf32>
    %150 = arith.mulf %147, %149 : vector<16x32xf32>
    %151 = vector.shape_cast %118 : vector<32xf32> to vector<1x32xf32>
    %152 = vector.broadcast %151 : vector<1x32xf32> to vector<16x32xf32>
    %153 = arith.addf %150, %152 : vector<16x32xf32>
    %c0_49 = arith.constant 0 : index
    %c0_50 = arith.constant 0 : index
    %c0_51 = arith.constant 0 : index
    %154 = vector.load %arg5[%c0_49, %c0_50, %c0_51] : memref<1x32x64xf32, #tpu.memory_space<vmem>>, vector<1x32x64xf32>
    %155 = vector.shape_cast %154 : vector<1x32x64xf32> to vector<32x64xf32>
    %cst_52 = arith.constant dense<0.000000e+00> : vector<16x64xf32>
    %156 = tpu.matmul %153, %155, %cst_52 {dimension_numbers = #tpu.dot_dimension_numbers<[1], [0], [0], [1], [0, 0, 1, 1], [], []>} : vector<16x32xf32>, vector<32x64xf32>, vector<16x64xf32> -> vector<16x64xf32>
    %c0_53 = arith.constant 0 : index
    %c0_54 = arith.constant 0 : index
    %c0_55 = arith.constant 0 : index
    %157 = vector.load %arg6[%c0_53, %c0_54, %c0_55] : memref<1x1x64xf32, #tpu.memory_space<vmem>>, vector<1x1x64xf32>
    %158 = vector.shape_cast %157 : vector<1x1x64xf32> to vector<64xf32>
    %159 = vector.shape_cast %158 : vector<64xf32> to vector<1x64xf32>
    %160 = vector.broadcast %159 : vector<1x64xf32> to vector<16x64xf32>
    %161 = arith.addf %156, %160 : vector<16x64xf32>
    %cst_56 = arith.constant 0.000000e+00 : f32
    %162 = vector.broadcast %cst_56 : f32 to vector<16x64xf32>
    %163 = arith.maximumf %161, %162 : vector<16x64xf32>
    %c0_57 = arith.constant 0 : index
    %c0_58 = arith.constant 0 : index
    %c0_59 = arith.constant 0 : index
    %164 = vector.load %arg7[%c0_57, %c0_58, %c0_59] : memref<1x64x32xf32, #tpu.memory_space<vmem>>, vector<1x64x32xf32>
    %165 = vector.shape_cast %164 : vector<1x64x32xf32> to vector<64x32xf32>
    %cst_60 = arith.constant dense<0.000000e+00> : vector<16x32xf32>
    %166 = tpu.matmul %163, %165, %cst_60 {dimension_numbers = #tpu.dot_dimension_numbers<[1], [0], [0], [1], [0, 0, 1, 1], [], []>} : vector<16x64xf32>, vector<64x32xf32>, vector<16x32xf32> -> vector<16x32xf32>
    %167 = vector.shape_cast %114 : vector<32xf32> to vector<1x32xf32>
    %168 = vector.broadcast %167 : vector<1x32xf32> to vector<16x32xf32>
    %169 = arith.addf %166, %168 : vector<16x32xf32>
    %170 = arith.addf %153, %169 : vector<16x32xf32>
    %cst_61 = arith.constant dense<0.000000e+00> : vector<16xf32>
    %171 = vector.multi_reduction <add>, %170, %cst_61 [1] : vector<16x32xf32> to vector<16xf32>
    %172 = vector.shape_cast %171 : vector<16xf32> to vector<16x1xf32>
    %cst_62 = arith.constant 3.200000e+01 : f32
    %173 = vector.broadcast %cst_62 : f32 to vector<16x1xf32>
    %174 = arith.divf %172, %173 : vector<16x1xf32>
    %175 = vector.broadcast %174 : vector<16x1xf32> to vector<16x32xf32>
    %176 = arith.subf %170, %175 : vector<16x32xf32>
    %177 = arith.mulf %176, %176 : vector<16x32xf32>
    %cst_63 = arith.constant dense<0.000000e+00> : vector<16xf32>
    %178 = vector.multi_reduction <add>, %177, %cst_63 [1] : vector<16x32xf32> to vector<16xf32>
    %179 = vector.shape_cast %178 : vector<16xf32> to vector<16x1xf32>
    %cst_64 = arith.constant 3.200000e+01 : f32
    %180 = vector.broadcast %cst_64 : f32 to vector<16x1xf32>
    %181 = arith.divf %179, %180 : vector<16x1xf32>
    %182 = vector.broadcast %174 : vector<16x1xf32> to vector<16x32xf32>
    %183 = arith.subf %170, %182 : vector<16x32xf32>
    %cst_65 = arith.constant 9.99999974E-6 : f32
    %184 = vector.broadcast %cst_65 : f32 to vector<16x1xf32>
    %185 = arith.addf %181, %184 : vector<16x1xf32>
    %186 = math.rsqrt %185 : vector<16x1xf32>
    %187 = vector.broadcast %186 : vector<16x1xf32> to vector<16x32xf32>
    %188 = arith.mulf %183, %187 : vector<16x32xf32>
    %189 = vector.shape_cast %120 : vector<32xf32> to vector<1x32xf32>
    %190 = vector.broadcast %189 : vector<1x32xf32> to vector<16x32xf32>
    %191 = arith.mulf %188, %190 : vector<16x32xf32>
    %192 = vector.shape_cast %122 : vector<32xf32> to vector<1x32xf32>
    %193 = vector.broadcast %192 : vector<1x32xf32> to vector<16x32xf32>
    %194 = arith.addf %191, %193 : vector<16x32xf32>
    %195 = vector.shape_cast %194 : vector<16x32xf32> to vector<2x8x32xf32>
    %c0_66 = arith.constant 0 : index
    %c0_67 = arith.constant 0 : index
    %c0_68 = arith.constant 0 : index
    %196 = vector.load %arg12[%c0_66, %c0_67, %c0_68] : memref<2x8x32xf32, #tpu.memory_space<vmem>>, vector<2x8x32xf32>
    tpu.vector_store %arg12[%c0_66, %c0_67, %c0_68], %195 {strides = array<i32>} : memref<2x8x32xf32, #tpu.memory_space<vmem>>, vector<2x8x32xf32>,
    %c1_i32 = arith.constant 1 : i32
    %197 = arith.cmpi eq, %arg0, %c1_i32 : i32
    %198 = arith.extui %197 : i1 to i32
    %c0_i32_69 = arith.constant 0 : i32
    %199 = arith.cmpi ne, %198, %c0_i32_69 : i32
    scf.if %199 {
      %c0_70 = arith.constant 0 : index
      %c0_71 = arith.constant 0 : index
      %200 = vector.load %arg9[%c0_70, %c0_71] : memref<2x32xf32, #tpu.memory_space<vmem>>, vector<1x32xf32>
      %201 = vector.shape_cast %200 : vector<1x32xf32> to vector<32xf32>
      %c1 = arith.constant 1 : index
      %c0_72 = arith.constant 0 : index
      %202 = vector.load %arg9[%c1, %c0_72] : memref<2x32xf32, #tpu.memory_space<vmem>>, vector<1x32xf32>
      %203 = vector.shape_cast %202 : vector<1x32xf32> to vector<32xf32>
      %cst_73 = arith.constant dense<0.000000e+00> : vector<16xf32>
      %204 = vector.multi_reduction <add>, %194, %cst_73 [1] : vector<16x32xf32> to vector<16xf32>
      %205 = vector.shape_cast %204 : vector<16xf32> to vector<16x1xf32>
      %cst_74 = arith.constant 3.200000e+01 : f32
      %206 = vector.broadcast %cst_74 : f32 to vector<16x1xf32>
      %207 = arith.divf %205, %206 : vector<16x1xf32>
      %208 = vector.broadcast %207 : vector<16x1xf32> to vector<16x32xf32>
      %209 = arith.subf %194, %208 : vector<16x32xf32>
      %210 = arith.mulf %209, %209 : vector<16x32xf32>
      %cst_75 = arith.constant dense<0.000000e+00> : vector<16xf32>
      %211 = vector.multi_reduction <add>, %210, %cst_75 [1] : vector<16x32xf32> to vector<16xf32>
      %212 = vector.shape_cast %211 : vector<16xf32> to vector<16x1xf32>
      %cst_76 = arith.constant 3.200000e+01 : f32
      %213 = vector.broadcast %cst_76 : f32 to vector<16x1xf32>
      %214 = arith.divf %212, %213 : vector<16x1xf32>
      %215 = vector.broadcast %207 : vector<16x1xf32> to vector<16x32xf32>
      %216 = arith.subf %194, %215 : vector<16x32xf32>
      %cst_77 = arith.constant 9.99999974E-6 : f32
      %217 = vector.broadcast %cst_77 : f32 to vector<16x1xf32>
      %218 = arith.addf %214, %217 : vector<16x1xf32>
      %219 = math.rsqrt %218 : vector<16x1xf32>
      %220 = vector.broadcast %219 : vector<16x1xf32> to vector<16x32xf32>
      %221 = arith.mulf %216, %220 : vector<16x32xf32>
      %222 = vector.shape_cast %201 : vector<32xf32> to vector<1x32xf32>
      %223 = vector.broadcast %222 : vector<1x32xf32> to vector<16x32xf32>
      %224 = arith.mulf %221, %223 : vector<16x32xf32>
      %225 = vector.shape_cast %203 : vector<32xf32> to vector<1x32xf32>
      %226 = vector.broadcast %225 : vector<1x32xf32> to vector<16x32xf32>
      %227 = arith.addf %224, %226 : vector<16x32xf32>
      %228 = vector.shape_cast %227 : vector<16x32xf32> to vector<2x8x32xf32>
      %c0_78 = arith.constant 0 : index
      %c0_79 = arith.constant 0 : index
      %c0_80 = arith.constant 0 : index
      %229 = vector.load %arg10[%c0_78, %c0_79, %c0_80] : memref<2x8x32xf32, #tpu.memory_space<vmem>>, vector<2x8x32xf32>
      tpu.vector_store %arg10[%c0_78, %c0_79, %c0_80], %228 {strides = array<i32>} : memref<2x8x32xf32, #tpu.memory_space<vmem>>, vector<2x8x32xf32>,
    } else {
    }
    return
  }
  func.func @transform_0(%arg0: i32) -> (i32, i32, i32) {
    %c0_i32 = arith.constant 0 : i32
    %c0_i32_0 = arith.constant 0 : i32
    %c0_i32_1 = arith.constant 0 : i32
    %c0_i32_2 = arith.constant 0 : i32
    return %c0_i32, %c0_i32_0, %c0_i32_1 : i32, i32, i32
  }
  func.func @transform_1(%arg0: i32) -> (i32, i32, i32) {
    %c0_i32 = arith.constant 0 : i32
    %c0_i32_0 = arith.constant 0 : i32
    %c0_i32_1 = arith.constant 0 : i32
    return %arg0, %c0_i32, %c0_i32_0 : i32, i32, i32
  }
  func.func @transform_2(%arg0: i32) -> (i32, i32, i32) {
    %c0_i32 = arith.constant 0 : i32
    %c0_i32_0 = arith.constant 0 : i32
    %c0_i32_1 = arith.constant 0 : i32
    return %arg0, %c0_i32, %c0_i32_0 : i32, i32, i32
  }
  func.func @transform_3(%arg0: i32) -> (i32, i32, i32) {
    %c0_i32 = arith.constant 0 : i32
    %c0_i32_0 = arith.constant 0 : i32
    %c0_i32_1 = arith.constant 0 : i32
    return %arg0, %c0_i32, %c0_i32_0 : i32, i32, i32
  }
  func.func @transform_4(%arg0: i32) -> (i32, i32, i32) {
    %c0_i32 = arith.constant 0 : i32
    %c0_i32_0 = arith.constant 0 : i32
    %c0_i32_1 = arith.constant 0 : i32
    return %arg0, %c0_i32, %c0_i32_0 : i32, i32, i32
  }
  func.func @transform_5(%arg0: i32) -> (i32, i32, i32) {
    %c0_i32 = arith.constant 0 : i32
    %c0_i32_0 = arith.constant 0 : i32
    %c0_i32_1 = arith.constant 0 : i32
    return %arg0, %c0_i32, %c0_i32_0 : i32, i32, i32
  }
  func.func @transform_6(%arg0: i32) -> (i32, i32, i32) {
    %c0_i32 = arith.constant 0 : i32
    %c0_i32_0 = arith.constant 0 : i32
    %c0_i32_1 = arith.constant 0 : i32
    return %arg0, %c0_i32, %c0_i32_0 : i32, i32, i32
  }
  func.func @transform_7(%arg0: i32) -> (i32, i32, i32) {
    %c0_i32 = arith.constant 0 : i32
    %c0_i32_0 = arith.constant 0 : i32
    %c0_i32_1 = arith.constant 0 : i32
    return %arg0, %c0_i32, %c0_i32_0 : i32, i32, i32
  }
  func.func @transform_8(%arg0: i32) -> (i32, i32) {
    %c0_i32 = arith.constant 0 : i32
    %c0_i32_0 = arith.constant 0 : i32
    %c0_i32_1 = arith.constant 0 : i32
    return %c0_i32, %c0_i32_0 : i32, i32
  }
  func.func @transform_9(%arg0: i32) -> (i32, i32, i32) {
    %c0_i32 = arith.constant 0 : i32
    %c0_i32_0 = arith.constant 0 : i32
    %c0_i32_1 = arith.constant 0 : i32
    %c0_i32_2 = arith.constant 0 : i32
    return %c0_i32, %c0_i32_0, %c0_i32_1 : i32, i32, i32
  }
  func.func @transform_10(%arg0: i32) -> (i32, i32, i32, i32) {
    %c0_i32 = arith.constant 0 : i32
    %c0_i32_0 = arith.constant 0 : i32
    %c0_i32_1 = arith.constant 0 : i32
    %c0_i32_2 = arith.constant 0 : i32
    return %arg0, %c0_i32, %c0_i32_0, %c0_i32_1 : i32, i32, i32, i32
  }
}

</mosaic_0001>

<llo_original>
// kernel: tpu_custom_call.1
$region0: #{tpu_custom_call.1}
  #allocation0 [shape = 'u32[]', space=smem, size = 0x4, offset = 0x4, fixed_abs, tag = 'smem constant byte address 0x4 - core index']
  #allocation1 [shape = 'u32[144,128]{1,0:T(1,128)}', space=vmem, size = 0x12000, scoped, tag = 'internal scratch']
  #allocation2 [shape = 'f32[2,8,32]{2,1,0:T(8,128)}', space=vmem, size = 0x2000, scoped, tag = 'scratch operand']
  %s0 = inlined_call_operand.vmem [shape: f32[2,8,32], index: 0, kind: input, shape index: {}]
  %s1 = inlined_call_operand.vmem [shape: f32[2,32,96], index: 1, kind: input, shape index: {}]
  %s2 = inlined_call_operand.vmem [shape: f32[2,1,96], index: 2, kind: input, shape index: {}]
  %s3 = inlined_call_operand.vmem [shape: f32[2,32,32], index: 3, kind: input, shape index: {}]
  %s4 = inlined_call_operand.vmem [shape: f32[2,32,64], index: 4, kind: input, shape index: {}]
  %s5 = inlined_call_operand.vmem [shape: f32[2,1,64], index: 5, kind: input, shape index: {}]
  %s6 = inlined_call_operand.vmem [shape: f32[2,64,32], index: 6, kind: input, shape index: {}]
  %s7 = inlined_call_operand.vmem [shape: f32[2,6,32], index: 7, kind: input, shape index: {}]
  %s8 = inlined_call_operand.vmem [shape: f32[2,32], index: 8, kind: input, shape index: {}]
  %s9 = inlined_call_operand.hbm [shape: f32[2,8,32], index: 9, kind: output, shape index: {0}]
  %s10 = inlined_call_operand.hbm [shape: f32[2,8,8,8], index: 10, kind: output, shape index: {1}]
  %11 = xla_tuple %s9, %s10
  %s12 = sld [smem:[#allocation0]]
  $region85: #{tpu_custom_call.1} parent=0
    _
  %s14 = ssub.s32 1, %s12
  %s15 = scalar_select 0, %s14, %s12
  $region1: #{tpu_custom_call.1} parent=0
    #allocation3 [shape = 'u8[8192]{0}', space=vmem, size = 0x2000, scoped, tag = 'output window, operand 0, single buffered']
    #allocation4 [shape = 's32[2]{0}', space=sflag, size = 0x8, scoped, tag = 'scoped memory for tpu_custom_call.1']
    #allocation5 [shape = 'u8[65536]{0}', space=vmem, size = 0x10000, scoped, tag = 'output window, operand 1']
    #allocation6 [shape = 's32[2]{0}', space=sflag, size = 0x8, scoped, tag = 'scoped memory for tpu_custom_call.1']
    %16 = vsyncpa [#allocation4], 0
    %17 = vsyncpa [#allocation6], 0
    %s18 = scalar_lea.sflag [#allocation6], 1
    %19 = vsyncpa %s18, 0
    loop: start=0, step=1, limit=4
    $region2: #{tpu_custom_call.1} parent=1 // loop_pre_header
      _
    $region3: #{tpu_custom_call.1} parent=1 // loop_header
      %s21 = sphi 0, %s25
      %p22 = scmp.ge.s32.totalorder %s21, 4
      %s29 = sphi 0, %s29
      %s31 = sphi 0, %s29
      %s32 = sphi 0, %s31
      %s46 = sphi 0, %s32
      %s52 = sphi 0, %s54
      %s55 = sphi 0, %s52
      %s56 = sphi 0, %s55
      %s72 = sphi 0, %s56
      %s78 = sphi 0, %s80
      %s81 = sphi 0, %s78
      %s82 = sphi 0, %s81
      %s98 = sphi 0, %s82
      %s104 = sphi 0, %s106
      %s107 = sphi 0, %s104
      %s108 = sphi 0, %s107
      %s124 = sphi 0, %s108
      %s130 = sphi 0, %s132
      %s133 = sphi 0, %s130
      %s134 = sphi 0, %s133
      %s150 = sphi 0, %s134
      %s156 = sphi 0, %s158
      %s159 = sphi 0, %s156
      %s160 = sphi 0, %s159
      %s176 = sphi 0, %s160
      %s182 = sphi 0, %s184
      %s185 = sphi 0, %s182
      %s186 = sphi 0, %s185
      %s202 = sphi 0, %s186
      %s208 = sphi 0, %s210
      %s211 = sphi 0, %s208
      %s212 = sphi 0, %s211
      %s228 = sphi 0, %s212
      %s232 = sphi 0, %s232
      %s234 = sphi 0, %s232
      %s235 = sphi 0, %s234
      %s249 = sphi 0, %s235
      %s253 = sphi 0, %s253
      %s255 = sphi 0, %s253
      %s256 = sphi 0, %s255
      %s270 = sphi 0, %s256
      %s276 = sphi 0, %s278
      %s279 = sphi 0, %s276
      %s280 = sphi 0, %s279
      %s296 = sphi 0, %s280
    $region4: #{tpu_custom_call.1} parent=1 // loop_header_branch
      %24 = sbr.rel (%p22) target = $region8
    $region5: #{tpu_custom_call.1} parent=1 // loop_body
      %s26 = ssub.s32 %s21, 1
      %s27 = ssub.s32 %s21, 2
      %s28 = sadd.s32 %s21, 1
      %s30 = sadd.s32 %s29, 1
      %p33 = scmp.eq.s32.totalorder %s21, 1
      %p34 = scmp.ne.s32.totalorder %s29, %s31
      %p35 = scmp.eq.s32.totalorder %s21, 0
      %p36 = por %p34, %p35
      %p37 = scmp.ne.s32.totalorder %s29, %s31
      %p38 = scmp.eq.s32.totalorder %s26, 1
      %p39 = por %p37, %p38
      %p40 = scmp.ne.s32.totalorder %s31, %s32
      %p41 = scmp.eq.s32.totalorder %s26, 0
      %p42 = por %p40, %p41
      %p43 = scmp.ne.s32.totalorder %s31, %s32
      %p44 = scmp.eq.s32.totalorder %s27, 1
      %p45 = por %p43, %p44
      %p47 = scmp.ne.s32.totalorder %s32, %s46
      %p48 = scmp.eq.s32.totalorder %s27, 0
      %p49 = por %p47, %p48
      %s50 = ssub.s32 %s21, %s28
      %p51 = scmp.eq.s32.totalorder %s50, 0
      %s53 = sadd.s32 %s52, 1
      %s54 = scalar_select %p51, %s52, %s53
      %p57 = pneg %p51
      %p58 = scmp.eq.s32.totalorder %s21, 1
      %p59 = por %p57, %p58
      %p60 = scmp.ne.s32.totalorder %s52, %s55
      %p61 = scmp.eq.s32.totalorder %s21, 0
      %p62 = por %p60, %p61
      %p63 = scmp.ne.s32.totalorder %s52, %s55
      %p64 = scmp.eq.s32.totalorder %s26, 1
      %p65 = por %p63, %p64
      %p66 = scmp.ne.s32.totalorder %s55, %s56
      %p67 = scmp.eq.s32.totalorder %s26, 0
      %p68 = por %p66, %p67
      %p69 = scmp.ne.s32.totalorder %s55, %s56
      %p70 = scmp.eq.s32.totalorder %s27, 1
      %p71 = por %p69, %p70
      %p73 = scmp.ne.s32.totalorder %s56, %s72
      %p74 = scmp.eq.s32.totalorder %s27, 0
      %p75 = por %p73, %p74
      %s76 = ssub.s32 %s21, %s28
      %p77 = scmp.eq.s32.totalorder %s76, 0
      %s79 = sadd.s32 %s78, 1
      %s80 = scalar_select %p77, %s78, %s79
      %p83 = pneg %p77
      %p84 = scmp.eq.s32.totalorder %s21, 1
      %p85 = por %p83, %p84
      %p86 = scmp.ne.s32.totalorder %s78, %s81
      %p87 = scmp.eq.s32.totalorder %s21, 0
      %p88 = por %p86, %p87
      %p89 = scmp.ne.s32.totalorder %s78, %s81
      %p90 = scmp.eq.s32.totalorder %s26, 1
      %p91 = por %p89, %p90
      %p92 = scmp.ne.s32.totalorder %s81, %s82
      %p93 = scmp.eq.s32.totalorder %s26, 0
      %p94 = por %p92, %p93
      %p95 = scmp.ne.s32.totalorder %s81, %s82
      %p96 = scmp.eq.s32.totalorder %s27, 1
      %p97 = por %p95, %p96
      %p99 = scmp.ne.s32.totalorder %s82, %s98
      %p100 = scmp.eq.s32.totalorder %s27, 0
      %p101 = por %p99, %p100
      %s102 = ssub.s32 %s21, %s28
      %p103 = scmp.eq.s32.totalorder %s102, 0
      %s105 = sadd.s32 %s104, 1
      %s106 = scalar_select %p103, %s104, %s105
      %p109 = pneg %p103
      %p110 = scmp.eq.s32.totalorder %s21, 1
      %p111 = por %p109, %p110
      %p112 = scmp.ne.s32.totalorder %s104, %s107
      %p113 = scmp.eq.s32.totalorder %s21, 0
      %p114 = por %p112, %p113
      %p115 = scmp.ne.s32.totalorder %s104, %s107
      %p116 = scmp.eq.s32.totalorder %s26, 1
      %p117 = por %p115, %p116
      %p118 = scmp.ne.s32.totalorder %s107, %s108
      %p119 = scmp.eq.s32.totalorder %s26, 0
      %p120 = por %p118, %p119
      %p121 = scmp.ne.s32.totalorder %s107, %s108
      %p122 = scmp.eq.s32.totalorder %s27, 1
      %p123 = por %p121, %p122
      %p125 = scmp.ne.s32.totalorder %s108, %s124
      %p126 = scmp.eq.s32.totalorder %s27, 0
      %p127 = por %p125, %p126
      %s128 = ssub.s32 %s21, %s28
      %p129 = scmp.eq.s32.totalorder %s128, 0
      %s131 = sadd.s32 %s130, 1
      %s132 = scalar_select %p129, %s130, %s131
      %p135 = pneg %p129
      %p136 = scmp.eq.s32.totalorder %s21, 1
      %p137 = por %p135, %p136
      %p138 = scmp.ne.s32.totalorder %s130, %s133
      %p139 = scmp.eq.s32.totalorder %s21, 0
      %p140 = por %p138, %p139
      %p141 = scmp.ne.s32.totalorder %s130, %s133
      %p142 = scmp.eq.s32.totalorder %s26, 1
      %p143 = por %p141, %p142
      %p144 = scmp.ne.s32.totalorder %s133, %s134
      %p145 = scmp.eq.s32.totalorder %s26, 0
      %p146 = por %p144, %p145
      %p147 = scmp.ne.s32.totalorder %s133, %s134
      %p148 = scmp.eq.s32.totalorder %s27, 1
      %p149 = por %p147, %p148
      %p151 = scmp.ne.s32.totalorder %s134, %s150
      %p152 = scmp.eq.s32.totalorder %s27, 0
      %p153 = por %p151, %p152
      %s154 = ssub.s32 %s21, %s28
      %p155 = scmp.eq.s32.totalorder %s154, 0
      %s157 = sadd.s32 %s156, 1
      %s158 = scalar_select %p155, %s156, %s157
      %p161 = pneg %p155
      %p162 = scmp.eq.s32.totalorder %s21, 1
      %p163 = por %p161, %p162
      %p164 = scmp.ne.s32.totalorder %s156, %s159
      %p165 = scmp.eq.s32.totalorder %s21, 0
      %p166 = por %p164, %p165
      %p167 = scmp.ne.s32.totalorder %s156, %s159
      %p168 = scmp.eq.s32.totalorder %s26, 1
      %p169 = por %p167, %p168
      %p170 = scmp.ne.s32.totalorder %s159, %s160
      %p171 = scmp.eq.s32.totalorder %s26, 0
      %p172 = por %p170, %p171
      %p173 = scmp.ne.s32.totalorder %s159, %s160
      %p174 = scmp.eq.s32.totalorder %s27, 1
      %p175 = por %p173, %p174
      %p177 = scmp.ne.s32.totalorder %s160, %s176
      %p178 = scmp.eq.s32.totalorder %s27, 0
      %p179 = por %p177, %p178
      %s180 = ssub.s32 %s21, %s28
      %p181 = scmp.eq.s32.totalorder %s180, 0
      %s183 = sadd.s32 %s182, 1
      %s184 = scalar_select %p181, %s182, %s183
      %p187 = pneg %p181
      %p188 = scmp.eq.s32.totalorder %s21, 1
      %p189 = por %p187, %p188
      %p190 = scmp.ne.s32.totalorder %s182, %s185
      %p191 = scmp.eq.s32.totalorder %s21, 0
      %p192 = por %p190, %p191
      %p193 = scmp.ne.s32.totalorder %s182, %s185
      %p194 = scmp.eq.s32.totalorder %s26, 1
      %p195 = por %p193, %p194
      %p196 = scmp.ne.s32.totalorder %s185, %s186
      %p197 = scmp.eq.s32.totalorder %s26, 0
      %p198 = por %p196, %p197
      %p199 = scmp.ne.s32.totalorder %s185, %s186
      %p200 = scmp.eq.s32.totalorder %s27, 1
      %p201 = por %p199, %p200
      %p203 = scmp.ne.s32.totalorder %s186, %s202
      %p204 = scmp.eq.s32.totalorder %s27, 0
      %p205 = por %p203, %p204
      %s206 = ssub.s32 %s21, %s28
      %p207 = scmp.eq.s32.totalorder %s206, 0
      %s209 = sadd.s32 %s208, 1
      %s210 = scalar_select %p207, %s208, %s209
      %p213 = pneg %p207
      %p214 = scmp.eq.s32.totalorder %s21, 1
      %p215 = por %p213, %p214
      %p216 = scmp.ne.s32.totalorder %s208, %s211
      %p217 = scmp.eq.s32.totalorder %s21, 0
      %p218 = por %p216, %p217
      %p219 = scmp.ne.s32.totalorder %s208, %s211
      %p220 = scmp.eq.s32.totalorder %s26, 1
      %p221 = por %p219, %p220
      %p222 = scmp.ne.s32.totalorder %s211, %s212
      %p223 = scmp.eq.s32.totalorder %s26, 0
      %p224 = por %p222, %p223
      %p225 = scmp.ne.s32.totalorder %s211, %s212
      %p226 = scmp.eq.s32.totalorder %s27, 1
      %p227 = por %p225, %p226
      %p229 = scmp.ne.s32.totalorder %s212, %s228
      %p230 = scmp.eq.s32.totalorder %s27, 0
      %p231 = por %p229, %p230
      %s233 = sadd.s32 %s232, 1
      %p236 = scmp.eq.s32.totalorder %s21, 1
      %p237 = scmp.ne.s32.totalorder %s232, %s234
      %p238 = scmp.eq.s32.totalorder %s21, 0
      %p239 = por %p237, %p238
      %p240 = scmp.ne.s32.totalorder %s232, %s234
      %p241 = scmp.eq.s32.totalorder %s26, 1
      %p242 = por %p240, %p241
      %p243 = scmp.ne.s32.totalorder %s234, %s235
      %p244 = scmp.eq.s32.totalorder %s26, 0
      %p245 = por %p243, %p244
      %p246 = scmp.ne.s32.totalorder %s234, %s235
      %p247 = scmp.eq.s32.totalorder %s27, 1
      %p248 = por %p246, %p247
      %p250 = scmp.ne.s32.totalorder %s235, %s249
      %p251 = scmp.eq.s32.totalorder %s27, 0
      %p252 = por %p250, %p251
      %s254 = sadd.s32 %s253, 1
      %p257 = scmp.eq.s32.totalorder %s21, 1
      %p258 = scmp.ne.s32.totalorder %s253, %s255
      %p259 = scmp.eq.s32.totalorder %s21, 0
      %p260 = por %p258, %p259
      %p261 = scmp.ne.s32.totalorder %s253, %s255
      %p262 = scmp.eq.s32.totalorder %s26, 1
      %p263 = por %p261, %p262
      %p264 = scmp.ne.s32.totalorder %s255, %s256
      %p265 = scmp.eq.s32.totalorder %s26, 0
      %p266 = por %p264, %p265
      %p267 = scmp.ne.s32.totalorder %s255, %s256
      %p268 = scmp.eq.s32.totalorder %s27, 1
      %p269 = por %p267, %p268
      %p271 = scmp.ne.s32.totalorder %s256, %s270
      %p272 = scmp.eq.s32.totalorder %s27, 0
      %p273 = por %p271, %p272
      %s274 = ssub.s32 %s21, %s28
      %p275 = scmp.eq.s32.totalorder %s274, 0
      %s277 = sadd.s32 %s276, 1
      %s278 = scalar_select %p275, %s276, %s277
      %p281 = pneg %p275
      %p282 = scmp.eq.s32.totalorder %s21, 1
      %p283 = por %p281, %p282
      %p284 = scmp.ne.s32.totalorder %s276, %s279
      %p285 = scmp.eq.s32.totalorder %s21, 0
      %p286 = por %p284, %p285
      %p287 = scmp.ne.s32.totalorder %s276, %s279
      %p288 = scmp.eq.s32.totalorder %s26, 1
      %p289 = por %p287, %p288
      %p290 = scmp.ne.s32.totalorder %s279, %s280
      %p291 = scmp.eq.s32.totalorder %s26, 0
      %p292 = por %p290, %p291
      %p293 = scmp.ne.s32.totalorder %s279, %s280
      %p294 = scmp.eq.s32.totalorder %s27, 1
      %p295 = por %p293, %p294
      %p297 = scmp.ne.s32.totalorder %s280, %s296
      %p298 = scmp.eq.s32.totalorder %s27, 0
      %p299 = por %p297, %p298
      %p300 = scmp.le.s32.totalorder 1, %s21
      %p301 = scmp.lt.s32.totalorder %s21, 3
      %p302 = pnand %p300, %p301
      %p303 = pneg %p302
      // Predicated region
      $region9: #{tpu_custom_call.1} parent=5 // pred_check
        _
      $region10: #{tpu_custom_call.1} parent=5 // pred_check_branch
        %305 = sbr.rel (%p302) target = $region12
      $region11: #{tpu_custom_call.1} parent=5 // pred_region
        %s306 = ssub.s32 %s21, 1
        // Predicated region
        $region13: #{tpu_custom_call.1} parent=11 // pred_check
          %p307 = pneg %p42
        $region14: #{tpu_custom_call.1} parent=11 // pred_check_branch
          %309 = sbr.rel (%p307) target = $region16
        $region15: #{tpu_custom_call.1} parent=11 // pred_region
          _
        $region16: #{tpu_custom_call.1} parent=11 // pred_fallthru
          _
        // Predicated region
        $region17: #{tpu_custom_call.1} parent=11 // pred_check
          %p310 = pneg %p245
        $region18: #{tpu_custom_call.1} parent=11 // pred_check_branch
          %312 = sbr.rel (%p310) target = $region20
        $region19: #{tpu_custom_call.1} parent=11 // pred_region
          _
        $region20: #{tpu_custom_call.1} parent=11 // pred_fallthru
          _
      $region12: #{tpu_custom_call.1} parent=5 // pred_fallthru
        _
      %p313 = scmp.lt.s32.totalorder %s21, 2
      // Predicated region
      $region21: #{tpu_custom_call.1} parent=5 // pred_check
        %p314 = pneg %p313
      $region22: #{tpu_custom_call.1} parent=5 // pred_check_branch
        %316 = sbr.rel (%p314) target = $region24
      $region23: #{tpu_custom_call.1} parent=5 // pred_region
        // Predicated region
        $region25: #{tpu_custom_call.1} parent=23 // pred_check
          %p317 = pneg %p62
        $region26: #{tpu_custom_call.1} parent=23 // pred_check_branch
          %319 = sbr.rel (%p317) target = $region28
        $region27: #{tpu_custom_call.1} parent=23 // pred_region
          %p320 = scmp.lt.s32.totalorder %s21, 1
          %s321 = scalar_select %p320, %s21, 1
          %s322 = smul.addr %s321, 4
          %s323 = smul.addr %s322, 8
          %s324 = scalar_lea.vmem %s1, %s323
        $region28: #{tpu_custom_call.1} parent=23 // pred_fallthru
          _
        // Predicated region
        $region29: #{tpu_custom_call.1} parent=23 // pred_check
          %p325 = pneg %p88
        $region30: #{tpu_custom_call.1} parent=23 // pred_check_branch
          %327 = sbr.rel (%p325) target = $region32
        $region31: #{tpu_custom_call.1} parent=23 // pred_region
          %p328 = scmp.lt.s32.totalorder %s21, 1
          %s329 = scalar_select %p328, %s21, 1
          %s330 = scalar_lea.vmem %s2, %s329
        $region32: #{tpu_custom_call.1} parent=23 // pred_fallthru
          _
        // Predicated region
        $region33: #{tpu_custom_call.1} parent=23 // pred_check
          %p331 = pneg %p114
        $region34: #{tpu_custom_call.1} parent=23 // pred_check_branch
          %333 = sbr.rel (%p331) target = $region36
        $region35: #{tpu_custom_call.1} parent=23 // pred_region
          %p334 = scmp.lt.s32.totalorder %s21, 1
          %s335 = scalar_select %p334, %s21, 1
          %s336 = smul.addr %s335, 4
          %s337 = smul.addr %s336, 8
          %s338 = scalar_lea.vmem %s3, %s337
        $region36: #{tpu_custom_call.1} parent=23 // pred_fallthru
          _
        // Predicated region
        $region37: #{tpu_custom_call.1} parent=23 // pred_check
          %p339 = pneg %p140
        $region38: #{tpu_custom_call.1} parent=23 // pred_check_branch
          %341 = sbr.rel (%p339) target = $region40
        $region39: #{tpu_custom_call.1} parent=23 // pred_region
          %p342 = scmp.lt.s32.totalorder %s21, 1
          %s343 = scalar_select %p342, %s21, 1
          %s344 = smul.addr %s343, 4
          %s345 = smul.addr %s344, 8
          %s346 = scalar_lea.vmem %s4, %s345
        $region40: #{tpu_custom_call.1} parent=23 // pred_fallthru
          _
        // Predicated region
        $region41: #{tpu_custom_call.1} parent=23 // pred_check
          %p347 = pneg %p166
        $region42: #{tpu_custom_call.1} parent=23 // pred_check_branch
          %349 = sbr.rel (%p347) target = $region44
        $region43: #{tpu_custom_call.1} parent=23 // pred_region
          %p350 = scmp.lt.s32.totalorder %s21, 1
          %s351 = scalar_select %p350, %s21, 1
          %s352 = scalar_lea.vmem %s5, %s351
        $region44: #{tpu_custom_call.1} parent=23 // pred_fallthru
          _
        // Predicated region
        $region45: #{tpu_custom_call.1} parent=23 // pred_check
          %p353 = pneg %p192
        $region46: #{tpu_custom_call.1} parent=23 // pred_check_branch
          %355 = sbr.rel (%p353) target = $region48
        $region47: #{tpu_custom_call.1} parent=23 // pred_region
          %p356 = scmp.lt.s32.totalorder %s21, 1
          %s357 = scalar_select %p356, %s21, 1
          %s358 = smul.addr %s357, 8
          %s359 = smul.addr %s358, 8
          %s360 = scalar_lea.vmem %s6, %s359
        $region48: #{tpu_custom_call.1} parent=23 // pred_fallthru
          _
        // Predicated region
        $region49: #{tpu_custom_call.1} parent=23 // pred_check
          %p361 = pneg %p218
        $region50: #{tpu_custom_call.1} parent=23 // pred_check_branch
          %363 = sbr.rel (%p361) target = $region52
        $region51: #{tpu_custom_call.1} parent=23 // pred_region
          %p364 = scmp.lt.s32.totalorder %s21, 1
          %s365 = scalar_select %p364, %s21, 1
          %s366 = smul.addr %s365, 8
          %s367 = scalar_lea.vmem %s7, %s366
        $region52: #{tpu_custom_call.1} parent=23 // pred_fallthru
          _
      $region24: #{tpu_custom_call.1} parent=5 // pred_fallthru
        _
      %p368 = scmp.le.s32.totalorder 1, %s21
      %p369 = scmp.lt.s32.totalorder %s21, 3
      %p370 = pnand %p368, %p369
      %p371 = pneg %p370
      // Predicated region
      $region53: #{tpu_custom_call.1} parent=5 // pred_check
        _
      $region54: #{tpu_custom_call.1} parent=5 // pred_check_branch
        %373 = sbr.rel (%p370) target = $region56
      $region55: #{tpu_custom_call.1} parent=5 // pred_region
        %s374 = ssub.s32 %s21, 1
        %p375 = pneg %p42
        %p376 = pneg %p39
        %p377 = scmp.lt.s32.totalorder %s26, 1
        %s378 = scalar_select %p377, %s26, 1
        %s379 = smul.addr %s378, 4
        %s380 = smul.addr %s379, 8
        %s381 = scalar_lea.vmem %s1, %s380
        %p382 = pneg %p68
        %p383 = pneg %p65
        %p384 = scmp.lt.s32.totalorder %s26, 1
        %s385 = scalar_select %p384, %s26, 1
        %s386 = scalar_lea.vmem %s2, %s385
        %p387 = pneg %p94
        %p388 = pneg %p91
        %p389 = scmp.lt.s32.totalorder %s26, 1
        %s390 = scalar_select %p389, %s26, 1
        %s391 = smul.addr %s390, 4
        %s392 = smul.addr %s391, 8
        %s393 = scalar_lea.vmem %s3, %s392
        %p394 = pneg %p120
        %p395 = pneg %p117
        %p396 = scmp.lt.s32.totalorder %s26, 1
        %s397 = scalar_select %p396, %s26, 1
        %s398 = smul.addr %s397, 4
        %s399 = smul.addr %s398, 8
        %s400 = scalar_lea.vmem %s4, %s399
        %p401 = pneg %p146
        %p402 = pneg %p143
        %p403 = scmp.lt.s32.totalorder %s26, 1
        %s404 = scalar_select %p403, %s26, 1
        %s405 = scalar_lea.vmem %s5, %s404
        %p406 = pneg %p172
        %p407 = pneg %p169
        %p408 = scmp.lt.s32.totalorder %s26, 1
        %s409 = scalar_select %p408, %s26, 1
        %s410 = smul.addr %s409, 8
        %s411 = smul.addr %s410, 8
        %s412 = scalar_lea.vmem %s6, %s411
        %p413 = pneg %p198
        %p414 = pneg %p195
        %p415 = scmp.lt.s32.totalorder %s26, 1
        %s416 = scalar_select %p415, %s26, 1
        %s417 = smul.addr %s416, 8
        %s418 = scalar_lea.vmem %s7, %s417
        %p419 = pneg %p224
        %p420 = pneg %p221
        %p421 = pneg %p245
        %p422 = pneg %p242
        %p423 = pneg %p266
        %p424 = pneg %p263
        %p425 = pneg %p292
        %p426 = pneg %p289
        %s427 = sand.u32 %s279, 1
        %s428 = scalar_lea.sflag [#allocation6], %s427
        %s429 = sand.u32 %s279, 1
        %s430 = smul.addr %s429, 64
        %s431 = scalar_lea.vmem [#allocation5], %s430
        %p432 = scmp.lt.s32.totalorder %s26, 1
        %s433 = scalar_select %p432, %s26, 1
        %s434 = smul.addr %s433, 4
        %s435 = smul.addr %s434, 8
        %s436 = scalar_lea.vmem %s1, %s435
        %p437 = scmp.lt.s32.totalorder %s26, 1
        %s438 = scalar_select %p437, %s26, 1
        %s439 = scalar_lea.vmem %s2, %s438
        %p440 = scmp.lt.s32.totalorder %s26, 1
        %s441 = scalar_select %p440, %s26, 1
        %s442 = smul.addr %s441, 4
        %s443 = smul.addr %s442, 8
        %s444 = scalar_lea.vmem %s3, %s443
        %p445 = scmp.lt.s32.totalorder %s26, 1
        %s446 = scalar_select %p445, %s26, 1
        %s447 = smul.addr %s446, 4
        %s448 = smul.addr %s447, 8
        %s449 = scalar_lea.vmem %s4, %s448
        %p450 = scmp.lt.s32.totalorder %s26, 1
        %s451 = scalar_select %p450, %s26, 1
        %s452 = scalar_lea.vmem %s5, %s451
        %p453 = scmp.lt.s32.totalorder %s26, 1
        %s454 = scalar_select %p453, %s26, 1
        %s455 = smul.addr %s454, 8
        %s456 = smul.addr %s455, 8
        %s457 = scalar_lea.vmem %s6, %s456
        %p458 = scmp.lt.s32.totalorder %s26, 1
        %s459 = scalar_select %p458, %s26, 1
        %s460 = smul.addr %s459, 8
        %s461 = scalar_lea.vmem %s7, %s460
        %p462 = scmp.eq.s32.totalorder %s26, 0
        // Predicated region
        $region57: #{tpu_custom_call.1} parent=55 // pred_check
          %p463 = pneg %p462
        $region58: #{tpu_custom_call.1} parent=55 // pred_check_branch
          %465 = sbr.rel (%p463) target = $region60
        $region59: #{tpu_custom_call.1} parent=55 // pred_region
          %v466 = vld [vmem:[%s0] sm:$0xff]
          %v467 = vld [vmem:[%s0 + $0x8] sm:$0xff]
          %vm468 = vcmask 261120
          %469 = vst.msk [vmem:[#allocation2] sm:$0xff] %vm468, %v466
          %470 = vst.msk [vmem:[#allocation2 + $0x8] sm:$0xff] %vm468, %v467
        $region60: #{tpu_custom_call.1} parent=55 // pred_fallthru
          _
        %v471 = vld [vmem:[#allocation2] sm:$0xff]
        %v472 = vld [vmem:[#allocation2 + $0x8] sm:$0xff]
        %v473 = vld [vmem:[%s436] sm:$0xff]
        %v474 = vld [vmem:[%s436 + $0x8] sm:$0xff]
        %v475 = vld [vmem:[%s436 + $0x10] sm:$0xff]
        %v476 = vld [vmem:[%s436 + $0x18] sm:$0xff]
        %v477 = vld [vmem:[%s439] sm:$0x1]
        %v479 = vlaneseq
        %v480 = vshrl.u32 %v479, 7
        %v481 = vsub.s32 0, %v480
        %v482 = vrot.slane %v477, %v481
        %vm484 = vcmask 261120
        %v486 = vsel %vm484, %v471, 0
        %v489 = vsel %vm484, %v472, 0
        %491 = vmatprep.subr.mxu0 0.0
        %492 = vmatpush1.msra.mxu0 0.0
        %493 = vmatprep.subr.mxu0 0.0
        %494 = vmatpush1.msra.mxu0 0.0
        %495 = vmatprep.subr.mxu0 0.0
        %496 = vmatpush1.msra.mxu0 0.0
        %497 = vmatprep.subr.mxu0 0.0
        %498 = vmatpush1.msra.mxu0 0.0
        %499 = vmatprep.subr.mxu0 0.0
        %500 = vmatpush1.msra.mxu0 0.0
        %501 = vmatprep.subr.mxu0 0.0
        %502 = vmatpush1.msra.mxu0 0.0
        %503 = vmatprep.subr.mxu0 0.0
        %504 = vmatpush1.msra.mxu0 0.0
        %505 = vmatprep.subr.mxu0 0.0
        %506 = vmatpush1.msra.mxu0 0.0
        %507 = vmatprep.subr.mxu0 0.0
        %508 = vmatpush1.msra.mxu0 0.0
        %509 = vmatprep.subr.mxu0 0.0
        %510 = vmatpush1.msra.mxu0 0.0
        %511 = vmatprep.subr.mxu0 0.0
        %512 = vmatpush1.msra.mxu0 0.0
        %513 = vmatprep.subr.mxu0 0.0
        %514 = vmatpush1.msra.mxu0 0.0
        %515 = vmatprep.subr.mxu0 0.0
        %516 = vmatpush1.msra.mxu0 %v476
        %517 = vmatprep.subr.mxu0 0.0
        %518 = vmatpush1.msra.mxu0 %v475
        %519 = vmatprep.subr.mxu0 0.0
        %520 = vmatpush1.msra.mxu0 %v474
        %521 = vmatprep.subr.mxu0 0.0
        %522 = vmatpush1.msra.mxu0 %v473
        %523 = vmatprep.subr.mxu0 0.0
        %524 = vmatpush2.msra.mxu0 0.0
        %525 = vmatprep.subr.mxu0 0.0
        %526 = vmatpush2.msra.mxu0 0.0
        %527 = vmatprep.subr.mxu0 0.0
        %528 = vmatpush2.msra.mxu0 0.0
        %529 = vmatprep.subr.mxu0 0.0
        %530 = vmatpush2.msra.mxu0 0.0
        %531 = vmatprep.subr.mxu0 0.0
        %532 = vmatpush2.msra.mxu0 0.0
        %533 = vmatprep.subr.mxu0 0.0
        %534 = vmatpush2.msra.mxu0 0.0
        %535 = vmatprep.subr.mxu0 0.0
        %536 = vmatpush2.msra.mxu0 0.0
        %537 = vmatprep.subr.mxu0 0.0
        %538 = vmatpush2.msra.mxu0 0.0
        %539 = vmatprep.subr.mxu0 0.0
        %540 = vmatpush2.msra.mxu0 0.0
        %541 = vmatprep.subr.mxu0 0.0
        %542 = vmatpush2.msra.mxu0 0.0
        %543 = vmatprep.subr.mxu0 0.0
        %544 = vmatpush2.msra.mxu0 0.0
        %545 = vmatprep.subr.mxu0 0.0
        %546 = vmatpush2.msra.mxu0 0.0
        %547 = vmatprep.subr.mxu0 0.0
        %548 = vmatpush2.msra.mxu0 0.0
        %549 = vmatprep.subr.mxu0 0.0
        %550 = vmatpush2.msra.mxu0 0.0
        %551 = vmatprep.subr.mxu0 0.0
        %552 = vmatpush2.msra.mxu0 0.0
        %553 = vmatprep.subr.mxu0 0.0
        %554 = vmatpush2.msra.mxu0 0.0
        %555 = vmatprep.mubr.f32.mxu0 0.0
        %556 = vmatmul.mubr.f32.gmra.mxu0 %v486
        %v557 = vpop.f32.mrf.mxu0
        %v558 = vadd.f32 %v482, %v557
        %v559 = vpop.f32.mrf.mxu0
        %560 = vmatprep.mubr.f32.mxu0 0.0
        %561 = vmatmul.mubr.f32.gmra.mxu0 %v489
        %v562 = vpop.f32.mrf.mxu0
        %v563 = vadd.f32 %v482, %v562
        %v564 = vpop.f32.mrf.mxu0
        %565 = vdwg.mxu0
        %567 = vrot.lane.b32.xlu0 %v558, 96
        %v568 = vpop.permute.xlu0 %567
        %vm569 = vcmask 64512
        %v570 = vsel %vm569, %v558, 0
        %v572 = vsel %vm569, %v568, 0
        %574 = vmatprep.subr.mxu0 0.0
        %575 = vmatpush1.xpose.msra.mxu0 0.0
        %576 = vmatprep.subr.mxu0 0.0
        %577 = vmatpush1.xpose.msra.mxu0 0.0
        %578 = vmatprep.subr.mxu0 0.0
        %579 = vmatpush1.xpose.msra.mxu0 0.0
        %580 = vmatprep.subr.mxu0 0.0
        %581 = vmatpush1.xpose.msra.mxu0 0.0
        %582 = vmatprep.subr.mxu0 0.0
        %583 = vmatpush1.xpose.msra.mxu0 0.0
        %584 = vmatprep.subr.mxu0 0.0
        %585 = vmatpush1.xpose.msra.mxu0 0.0
        %586 = vmatprep.subr.mxu0 0.0
        %587 = vmatpush1.xpose.msra.mxu0 0.0
        %588 = vmatprep.subr.mxu0 0.0
        %589 = vmatpush1.xpose.msra.mxu0 0.0
        %590 = vmatprep.subr.mxu0 0.0
        %591 = vmatpush1.xpose.msra.mxu0 0.0
        %592 = vmatprep.subr.mxu0 0.0
        %593 = vmatpush1.xpose.msra.mxu0 0.0
        %594 = vmatprep.subr.mxu0 0.0
        %595 = vmatpush1.xpose.msra.mxu0 0.0
        %596 = vmatprep.subr.mxu0 0.0
        %597 = vmatpush1.xpose.msra.mxu0 0.0
        %598 = vmatprep.subr.mxu0 0.0
        %599 = vmatpush1.xpose.msra.mxu0 0.0
        %600 = vmatprep.subr.mxu0 0.0
        %601 = vmatpush1.xpose.msra.mxu0 0.0
        %602 = vmatprep.subr.mxu0 0.0
        %603 = vmatpush1.xpose.msra.mxu0 0.0
        %604 = vmatprep.subr.mxu0 0.0
        %605 = vmatpush1.xpose.msra.mxu0 %v572
        %606 = vmatprep.subr.mxu0 0.0
        %607 = vmatpush2.xpose.msra.mxu0 0.0
        %608 = vmatprep.subr.mxu0 0.0
        %609 = vmatpush2.xpose.msra.mxu0 0.0
        %610 = vmatprep.subr.mxu0 0.0
        %611 = vmatpush2.xpose.msra.mxu0 0.0
        %612 = vmatprep.subr.mxu0 0.0
        %613 = vmatpush2.xpose.msra.mxu0 0.0
        %614 = vmatprep.subr.mxu0 0.0
        %615 = vmatpush2.xpose.msra.mxu0 0.0
        %616 = vmatprep.subr.mxu0 0.0
        %617 = vmatpush2.xpose.msra.mxu0 0.0
        %618 = vmatprep.subr.mxu0 0.0
        %619 = vmatpush2.xpose.msra.mxu0 0.0
        %620 = vmatprep.subr.mxu0 0.0
        %621 = vmatpush2.xpose.msra.mxu0 0.0
        %622 = vmatprep.subr.mxu0 0.0
        %623 = vmatpush2.xpose.msra.mxu0 0.0
        %624 = vmatprep.subr.mxu0 0.0
        %625 = vmatpush2.xpose.msra.mxu0 0.0
        %626 = vmatprep.subr.mxu0 0.0
        %627 = vmatpush2.xpose.msra.mxu0 0.0
        %628 = vmatprep.subr.mxu0 0.0
        %629 = vmatpush2.xpose.msra.mxu0 0.0
        %630 = vmatprep.subr.mxu0 0.0
        %631 = vmatpush2.xpose.msra.mxu0 0.0
        %632 = vmatprep.subr.mxu0 0.0
        %633 = vmatpush2.xpose.msra.mxu0 0.0
        %634 = vmatprep.subr.mxu0 0.0
        %635 = vmatpush2.xpose.msra.mxu0 0.0
        %636 = vmatprep.subr.mxu0 0.0
        %637 = vmatpush2.xpose.msra.mxu0 0.0
        %638 = vmatprep.mubr.f32.mxu0 0.0
        %639 = vmatmul.mubr.f32.gmra.mxu0 %v570
        %v640 = vpop.f32.mrf.mxu0
        %v641 = vadd.f32 0.0, %v640
        %v642 = vpop.f32.mrf.mxu0
        %643 = vdwg.mxu0
        %645 = vrot.lane.b32.xlu0 %v563, 96
        %v646 = vpop.permute.xlu0 %645
        %v647 = vsel %vm569, %v563, 0
        %v649 = vsel %vm569, %v646, 0
        %651 = vmatprep.subr.mxu0 0.0
        %652 = vmatpush1.xpose.msra.mxu0 0.0
        %653 = vmatprep.subr.mxu0 0.0
        %654 = vmatpush1.xpose.msra.mxu0 0.0
        %655 = vmatprep.subr.mxu0 0.0
        %656 = vmatpush1.xpose.msra.mxu0 0.0
        %657 = vmatprep.subr.mxu0 0.0
        %658 = vmatpush1.xpose.msra.mxu0 0.0
        %659 = vmatprep.subr.mxu0 0.0
        %660 = vmatpush1.xpose.msra.mxu0 0.0
        %661 = vmatprep.subr.mxu0 0.0
        %662 = vmatpush1.xpose.msra.mxu0 0.0
        %663 = vmatprep.subr.mxu0 0.0
        %664 = vmatpush1.xpose.msra.mxu0 0.0
        %665 = vmatprep.subr.mxu0 0.0
        %666 = vmatpush1.xpose.msra.mxu0 0.0
        %667 = vmatprep.subr.mxu0 0.0
        %668 = vmatpush1.xpose.msra.mxu0 0.0
        %669 = vmatprep.subr.mxu0 0.0
        %670 = vmatpush1.xpose.msra.mxu0 0.0
        %671 = vmatprep.subr.mxu0 0.0
        %672 = vmatpush1.xpose.msra.mxu0 0.0
        %673 = vmatprep.subr.mxu0 0.0
        %674 = vmatpush1.xpose.msra.mxu0 0.0
        %675 = vmatprep.subr.mxu0 0.0
        %676 = vmatpush1.xpose.msra.mxu0 0.0
        %677 = vmatprep.subr.mxu0 0.0
        %678 = vmatpush1.xpose.msra.mxu0 0.0
        %679 = vmatprep.subr.mxu0 0.0
        %680 = vmatpush1.xpose.msra.mxu0 0.0
        %681 = vmatprep.subr.mxu0 0.0
        %682 = vmatpush1.xpose.msra.mxu0 %v649
        %683 = vmatprep.subr.mxu0 0.0
        %684 = vmatpush2.xpose.msra.mxu0 0.0
        %685 = vmatprep.subr.mxu0 0.0
        %686 = vmatpush2.xpose.msra.mxu0 0.0
        %687 = vmatprep.subr.mxu0 0.0
        %688 = vmatpush2.xpose.msra.mxu0 0.0
        %689 = vmatprep.subr.mxu0 0.0
        %690 = vmatpush2.xpose.msra.mxu0 0.0
        %691 = vmatprep.subr.mxu0 0.0
        %692 = vmatpush2.xpose.msra.mxu0 0.0
        %693 = vmatprep.subr.mxu0 0.0
        %694 = vmatpush2.xpose.msra.mxu0 0.0
        %695 = vmatprep.subr.mxu0 0.0
        %696 = vmatpush2.xpose.msra.mxu0 0.0
        %697 = vmatprep.subr.mxu0 0.0
        %698 = vmatpush2.xpose.msra.mxu0 0.0
        %699 = vmatprep.subr.mxu0 0.0
        %700 = vmatpush2.xpose.msra.mxu0 0.0
        %701 = vmatprep.subr.mxu0 0.0
        %702 = vmatpush2.xpose.msra.mxu0 0.0
        %703 = vmatprep.subr.mxu0 0.0
        %704 = vmatpush2.xpose.msra.mxu0 0.0
        %705 = vmatprep.subr.mxu0 0.0
        %706 = vmatpush2.xpose.msra.mxu0 0.0
        %707 = vmatprep.subr.mxu0 0.0
        %708 = vmatpush2.xpose.msra.mxu0 0.0
        %709 = vmatprep.subr.mxu0 0.0
        %710 = vmatpush2.xpose.msra.mxu0 0.0
        %711 = vmatprep.subr.mxu0 0.0
        %712 = vmatpush2.xpose.msra.mxu0 0.0
        %713 = vmatprep.subr.mxu0 0.0
        %714 = vmatpush2.xpose.msra.mxu0 0.0
        %715 = vmatprep.mubr.f32.mxu0 0.0
        %716 = vmatmul.mubr.f32.gmra.mxu0 %v647
        %v717 = vpop.f32.mrf.mxu0
        %v718 = vadd.f32 0.0, %v717
        %v719 = vpop.f32.mrf.mxu0
        %720 = vdwg.mxu0
        %v721 = vmul.f32 %v641, 0.35355338
        %v722 = vmul.f32 %v718, 0.35355338
        %v723 = vsel %vm569, %v721, -inf
        %724 = vmax.xlane.f32.xlu0 %v723
        %v725 = vpop.xlane.xlu0 %724
        %v726 = vsel %vm569, %v722, -inf
        %727 = vmax.xlane.f32.xlu0 %v726
        %v728 = vpop.xlane.xlu0 %727
        %v729 = vsub.f32 %v721, %v725
        %v730 = vsub.f32 %v722, %v728
        %v731 = vmul.f32 %v729, 1.442695
        %v732 = vpow.pop %v731
        %v733 = vmul.f32 %v730, 1.442695
        %v734 = vpow.pop %v733
        %v735 = vsel %vm569, %v732, 0.0
        %736 = vadd.xlane.f32.xlu0 %v735
        %v737 = vpop.xlane.xlu0 %736
        %v738 = vsel %vm569, %v734, 0.0
        %739 = vadd.xlane.f32.xlu0 %v738
        %v740 = vpop.xlane.xlu0 %739
        %v741 = vrcp.pop %v737
        %v742 = vrcp.pop %v740
        %v743 = vmul.f32 %v737, %v741
        %v744 = vmul.f32 %v740, %v742
        %v745 = vsub.f32 2.0, %v743
        %v746 = vsub.f32 2.0, %v744
        %v747 = vmul.f32 %v741, %v745
        %v748 = vmul.f32 %v742, %v746
        %v749 = vmul.f32 %v732, %v747
        %v750 = vmul.f32 %v734, %v748
        %751 = vrot.lane.b32.xlu0 %v558, 64
        %v752 = vpop.permute.xlu0 %751
        %v755 = vsel %vm569, %v749, 0
        %757 = vmatprep.subr.mxu0 0.0
        %758 = vmatpush1.msra.mxu0 0.0
        %759 = vmatprep.subr.mxu0 0.0
        %760 = vmatpush1.msra.mxu0 0.0
        %761 = vmatprep.subr.mxu0 0.0
        %762 = vmatpush1.msra.mxu0 0.0
        %763 = vmatprep.subr.mxu0 0.0
        %764 = vmatpush1.msra.mxu0 0.0
        %765 = vmatprep.subr.mxu0 0.0
        %766 = vmatpush1.msra.mxu0 0.0
        %767 = vmatprep.subr.mxu0 0.0
        %768 = vmatpush1.msra.mxu0 0.0
        %769 = vmatprep.subr.mxu0 0.0
        %770 = vmatpush1.msra.mxu0 0.0
        %771 = vmatprep.subr.mxu0 0.0
        %772 = vmatpush1.msra.mxu0 0.0
        %773 = vmatprep.subr.mxu0 0.0
        %774 = vmatpush1.msra.mxu0 0.0
        %775 = vmatprep.subr.mxu0 0.0
        %776 = vmatpush1.msra.mxu0 0.0
        %777 = vmatprep.subr.mxu0 0.0
        %778 = vmatpush1.msra.mxu0 0.0
        %779 = vmatprep.subr.mxu0 0.0
        %780 = vmatpush1.msra.mxu0 0.0
        %781 = vmatprep.subr.mxu0 0.0
        %782 = vmatpush1.msra.mxu0 0.0
        %783 = vmatprep.subr.mxu0 0.0
        %784 = vmatpush1.msra.mxu0 0.0
        %785 = vmatprep.subr.mxu0 0.0
        %786 = vmatpush1.msra.mxu0 0.0
        %787 = vmatprep.subr.mxu0 0.0
        %788 = vmatpush1.msra.mxu0 %v752
        %789 = vmatprep.subr.mxu0 0.0
        %790 = vmatpush2.msra.mxu0 0.0
        %791 = vmatprep.subr.mxu0 0.0
        %792 = vmatpush2.msra.mxu0 0.0
        %793 = vmatprep.subr.mxu0 0.0
        %794 = vmatpush2.msra.mxu0 0.0
        %795 = vmatprep.subr.mxu0 0.0
        %796 = vmatpush2.msra.mxu0 0.0
        %797 = vmatprep.subr.mxu0 0.0
        %798 = vmatpush2.msra.mxu0 0.0
        %799 = vmatprep.subr.mxu0 0.0
        %800 = vmatpush2.msra.mxu0 0.0
        %801 = vmatprep.subr.mxu0 0.0
        %802 = vmatpush2.msra.mxu0 0.0
        %803 = vmatprep.subr.mxu0 0.0
        %804 = vmatpush2.msra.mxu0 0.0
        %805 = vmatprep.subr.mxu0 0.0
        %806 = vmatpush2.msra.mxu0 0.0
        %807 = vmatprep.subr.mxu0 0.0
        %808 = vmatpush2.msra.mxu0 0.0
        %809 = vmatprep.subr.mxu0 0.0
        %810 = vmatpush2.msra.mxu0 0.0
        %811 = vmatprep.subr.mxu0 0.0
        %812 = vmatpush2.msra.mxu0 0.0
        %813 = vmatprep.subr.mxu0 0.0
        %814 = vmatpush2.msra.mxu0 0.0
        %815 = vmatprep.subr.mxu0 0.0
        %816 = vmatpush2.msra.mxu0 0.0
        %817 = vmatprep.subr.mxu0 0.0
        %818 = vmatpush2.msra.mxu0 0.0
        %819 = vmatprep.subr.mxu0 0.0
        %820 = vmatpush2.msra.mxu0 0.0
        %821 = vmatprep.mubr.f32.mxu0 0.0
        %822 = vmatmul.mubr.f32.gmra.mxu0 %v755
        %v823 = vpop.f32.mrf.mxu0
        %v824 = vadd.f32 0.0, %v823
        %v825 = vpop.f32.mrf.mxu0
        %826 = vdwg.mxu0
        %827 = vrot.lane.b32.xlu0 %v563, 64
        %v828 = vpop.permute.xlu0 %827
        %v831 = vsel %vm569, %v750, 0
        %833 = vmatprep.subr.mxu0 0.0
        %834 = vmatpush1.msra.mxu0 0.0
        %835 = vmatprep.subr.mxu0 0.0
        %836 = vmatpush1.msra.mxu0 0.0
        %837 = vmatprep.subr.mxu0 0.0
        %838 = vmatpush1.msra.mxu0 0.0
        %839 = vmatprep.subr.mxu0 0.0
        %840 = vmatpush1.msra.mxu0 0.0
        %841 = vmatprep.subr.mxu0 0.0
        %842 = vmatpush1.msra.mxu0 0.0
        %843 = vmatprep.subr.mxu0 0.0
        %844 = vmatpush1.msra.mxu0 0.0
        %845 = vmatprep.subr.mxu0 0.0
        %846 = vmatpush1.msra.mxu0 0.0
        %847 = vmatprep.subr.mxu0 0.0
        %848 = vmatpush1.msra.mxu0 0.0
        %849 = vmatprep.subr.mxu0 0.0
        %850 = vmatpush1.msra.mxu0 0.0
        %851 = vmatprep.subr.mxu0 0.0
        %852 = vmatpush1.msra.mxu0 0.0
        %853 = vmatprep.subr.mxu0 0.0
        %854 = vmatpush1.msra.mxu0 0.0
        %855 = vmatprep.subr.mxu0 0.0
        %856 = vmatpush1.msra.mxu0 0.0
        %857 = vmatprep.subr.mxu0 0.0
        %858 = vmatpush1.msra.mxu0 0.0
        %859 = vmatprep.subr.mxu0 0.0
        %860 = vmatpush1.msra.mxu0 0.0
        %861 = vmatprep.subr.mxu0 0.0
        %862 = vmatpush1.msra.mxu0 0.0
        %863 = vmatprep.subr.mxu0 0.0
        %864 = vmatpush1.msra.mxu0 %v828
        %865 = vmatprep.subr.mxu0 0.0
        %866 = vmatpush2.msra.mxu0 0.0
        %867 = vmatprep.subr.mxu0 0.0
        %868 = vmatpush2.msra.mxu0 0.0
        %869 = vmatprep.subr.mxu0 0.0
        %870 = vmatpush2.msra.mxu0 0.0
        %871 = vmatprep.subr.mxu0 0.0
        %872 = vmatpush2.msra.mxu0 0.0
        %873 = vmatprep.subr.mxu0 0.0
        %874 = vmatpush2.msra.mxu0 0.0
        %875 = vmatprep.subr.mxu0 0.0
        %876 = vmatpush2.msra.mxu0 0.0
        %877 = vmatprep.subr.mxu0 0.0
        %878 = vmatpush2.msra.mxu0 0.0
        %879 = vmatprep.subr.mxu0 0.0
        %880 = vmatpush2.msra.mxu0 0.0
        %881 = vmatprep.subr.mxu0 0.0
        %882 = vmatpush2.msra.mxu0 0.0
        %883 = vmatprep.subr.mxu0 0.0
        %884 = vmatpush2.msra.mxu0 0.0
        %885 = vmatprep.subr.mxu0 0.0
        %886 = vmatpush2.msra.mxu0 0.0
        %887 = vmatprep.subr.mxu0 0.0
        %888 = vmatpush2.msra.mxu0 0.0
        %889 = vmatprep.subr.mxu0 0.0
        %890 = vmatpush2.msra.mxu0 0.0
        %891 = vmatprep.subr.mxu0 0.0
        %892 = vmatpush2.msra.mxu0 0.0
        %893 = vmatprep.subr.mxu0 0.0
        %894 = vmatpush2.msra.mxu0 0.0
        %895 = vmatprep.subr.mxu0 0.0
        %896 = vmatpush2.msra.mxu0 0.0
        %897 = vmatprep.mubr.f32.mxu0 0.0
        %898 = vmatmul.mubr.f32.gmra.mxu0 %v831
        %v899 = vpop.f32.mrf.mxu0
        %v900 = vadd.f32 0.0, %v899
        %v901 = vpop.f32.mrf.mxu0
        %902 = vdwg.mxu0
        %903 = vrot.lane.b32.xlu0 %v558, 120
        %v904 = vpop.permute.xlu0 %903
        %905 = vrot.lane.b32.xlu0 %v558, 88
        %v906 = vpop.permute.xlu0 %905
        %v907 = vsel %vm569, %v904, 0
        %v909 = vsel %vm569, %v906, 0
        %911 = vmatprep.subr.mxu0 0.0
        %912 = vmatpush1.xpose.msra.mxu0 0.0
        %913 = vmatprep.subr.mxu0 0.0
        %914 = vmatpush1.xpose.msra.mxu0 0.0
        %915 = vmatprep.subr.mxu0 0.0
        %916 = vmatpush1.xpose.msra.mxu0 0.0
        %917 = vmatprep.subr.mxu0 0.0
        %918 = vmatpush1.xpose.msra.mxu0 0.0
        %919 = vmatprep.subr.mxu0 0.0
        %920 = vmatpush1.xpose.msra.mxu0 0.0
        %921 = vmatprep.subr.mxu0 0.0
        %922 = vmatpush1.xpose.msra.mxu0 0.0
        %923 = vmatprep.subr.mxu0 0.0
        %924 = vmatpush1.xpose.msra.mxu0 0.0
        %925 = vmatprep.subr.mxu0 0.0
        %926 = vmatpush1.xpose.msra.mxu0 0.0
        %927 = vmatprep.subr.mxu0 0.0
        %928 = vmatpush1.xpose.msra.mxu0 0.0
        %929 = vmatprep.subr.mxu0 0.0
        %930 = vmatpush1.xpose.msra.mxu0 0.0
        %931 = vmatprep.subr.mxu0 0.0
        %932 = vmatpush1.xpose.msra.mxu0 0.0
        %933 = vmatprep.subr.mxu0 0.0
        %934 = vmatpush1.xpose.msra.mxu0 0.0
        %935 = vmatprep.subr.mxu0 0.0
        %936 = vmatpush1.xpose.msra.mxu0 0.0
        %937 = vmatprep.subr.mxu0 0.0
        %938 = vmatpush1.xpose.msra.mxu0 0.0
        %939 = vmatprep.subr.mxu0 0.0
        %940 = vmatpush1.xpose.msra.mxu0 0.0
        %941 = vmatprep.subr.mxu0 0.0
        %942 = vmatpush1.xpose.msra.mxu0 %v909
        %943 = vmatprep.subr.mxu0 0.0
        %944 = vmatpush2.xpose.msra.mxu0 0.0
        %945 = vmatprep.subr.mxu0 0.0
        %946 = vmatpush2.xpose.msra.mxu0 0.0
        %947 = vmatprep.subr.mxu0 0.0
        %948 = vmatpush2.xpose.msra.mxu0 0.0
        %949 = vmatprep.subr.mxu0 0.0
        %950 = vmatpush2.xpose.msra.mxu0 0.0
        %951 = vmatprep.subr.mxu0 0.0
        %952 = vmatpush2.xpose.msra.mxu0 0.0
        %953 = vmatprep.subr.mxu0 0.0
        %954 = vmatpush2.xpose.msra.mxu0 0.0
        %955 = vmatprep.subr.mxu0 0.0
        %956 = vmatpush2.xpose.msra.mxu0 0.0
        %957 = vmatprep.subr.mxu0 0.0
        %958 = vmatpush2.xpose.msra.mxu0 0.0
        %959 = vmatprep.subr.mxu0 0.0
        %960 = vmatpush2.xpose.msra.mxu0 0.0
        %961 = vmatprep.subr.mxu0 0.0
        %962 = vmatpush2.xpose.msra.mxu0 0.0
        %963 = vmatprep.subr.mxu0 0.0
        %964 = vmatpush2.xpose.msra.mxu0 0.0
        %965 = vmatprep.subr.mxu0 0.0
        %966 = vmatpush2.xpose.msra.mxu0 0.0
        %967 = vmatprep.subr.mxu0 0.0
        %968 = vmatpush2.xpose.msra.mxu0 0.0
        %969 = vmatprep.subr.mxu0 0.0
        %970 = vmatpush2.xpose.msra.mxu0 0.0
        %971 = vmatprep.subr.mxu0 0.0
        %972 = vmatpush2.xpose.msra.mxu0 0.0
        %973 = vmatprep.subr.mxu0 0.0
        %974 = vmatpush2.xpose.msra.mxu0 0.0
        %975 = vmatprep.mubr.f32.mxu0 0.0
        %976 = vmatmul.mubr.f32.gmra.mxu0 %v907
        %v977 = vpop.f32.mrf.mxu0
        %v978 = vadd.f32 0.0, %v977
        %v979 = vpop.f32.mrf.mxu0
        %980 = vdwg.mxu0
        %981 = vrot.lane.b32.xlu0 %v563, 120
        %v982 = vpop.permute.xlu0 %981
        %983 = vrot.lane.b32.xlu0 %v563, 88
        %v984 = vpop.permute.xlu0 %983
        %v985 = vsel %vm569, %v982, 0
        %v987 = vsel %vm569, %v984, 0
        %989 = vmatprep.subr.mxu0 0.0
        %990 = vmatpush1.xpose.msra.mxu0 0.0
        %991 = vmatprep.subr.mxu0 0.0
        %992 = vmatpush1.xpose.msra.mxu0 0.0
        %993 = vmatprep.subr.mxu0 0.0
        %994 = vmatpush1.xpose.msra.mxu0 0.0
        %995 = vmatprep.subr.mxu0 0.0
        %996 = vmatpush1.xpose.msra.mxu0 0.0
        %997 = vmatprep.subr.mxu0 0.0
        %998 = vmatpush1.xpose.msra.mxu0 0.0
        %999 = vmatprep.subr.mxu0 0.0
        %1000 = vmatpush1.xpose.msra.mxu0 0.0
        %1001 = vmatprep.subr.mxu0 0.0
        %1002 = vmatpush1.xpose.msra.mxu0 0.0
        %1003 = vmatprep.subr.mxu0 0.0
        %1004 = vmatpush1.xpose.msra.mxu0 0.0
        %1005 = vmatprep.subr.mxu0 0.0
        %1006 = vmatpush1.xpose.msra.mxu0 0.0
        %1007 = vmatprep.subr.mxu0 0.0
        %1008 = vmatpush1.xpose.msra.mxu0 0.0
        %1009 = vmatprep.subr.mxu0 0.0
        %1010 = vmatpush1.xpose.msra.mxu0 0.0
        %1011 = vmatprep.subr.mxu0 0.0
        %1012 = vmatpush1.xpose.msra.mxu0 0.0
        %1013 = vmatprep.subr.mxu0 0.0
        %1014 = vmatpush1.xpose.msra.mxu0 0.0
        %1015 = vmatprep.subr.mxu0 0.0
        %1016 = vmatpush1.xpose.msra.mxu0 0.0
        %1017 = vmatprep.subr.mxu0 0.0
        %1018 = vmatpush1.xpose.msra.mxu0 0.0
        %1019 = vmatprep.subr.mxu0 0.0
        %1020 = vmatpush1.xpose.msra.mxu0 %v987
        %1021 = vmatprep.subr.mxu0 0.0
        %1022 = vmatpush2.xpose.msra.mxu0 0.0
        %1023 = vmatprep.subr.mxu0 0.0
        %1024 = vmatpush2.xpose.msra.mxu0 0.0
        %1025 = vmatprep.subr.mxu0 0.0
        %1026 = vmatpush2.xpose.msra.mxu0 0.0
        %1027 = vmatprep.subr.mxu0 0.0
        %1028 = vmatpush2.xpose.msra.mxu0 0.0
        %1029 = vmatprep.subr.mxu0 0.0
        %1030 = vmatpush2.xpose.msra.mxu0 0.0
        %1031 = vmatprep.subr.mxu0 0.0
        %1032 = vmatpush2.xpose.msra.mxu0 0.0
        %1033 = vmatprep.subr.mxu0 0.0
        %1034 = vmatpush2.xpose.msra.mxu0 0.0
        %1035 = vmatprep.subr.mxu0 0.0
        %1036 = vmatpush2.xpose.msra.mxu0 0.0
        %1037 = vmatprep.subr.mxu0 0.0
        %1038 = vmatpush2.xpose.msra.mxu0 0.0
        %1039 = vmatprep.subr.mxu0 0.0
        %1040 = vmatpush2.xpose.msra.mxu0 0.0
        %1041 = vmatprep.subr.mxu0 0.0
        %1042 = vmatpush2.xpose.msra.mxu0 0.0
        %1043 = vmatprep.subr.mxu0 0.0
        %1044 = vmatpush2.xpose.msra.mxu0 0.0
        %1045 = vmatprep.subr.mxu0 0.0
        %1046 = vmatpush2.xpose.msra.mxu0 0.0
        %1047 = vmatprep.subr.mxu0 0.0
        %1048 = vmatpush2.xpose.msra.mxu0 0.0
        %1049 = vmatprep.subr.mxu0 0.0
        %1050 = vmatpush2.xpose.msra.mxu0 0.0
        %1051 = vmatprep.subr.mxu0 0.0
        %1052 = vmatpush2.xpose.msra.mxu0 0.0
        %1053 = vmatprep.mubr.f32.mxu0 0.0
        %1054 = vmatmul.mubr.f32.gmra.mxu0 %v985
        %v1055 = vpop.f32.mrf.mxu0
        %v1056 = vadd.f32 0.0, %v1055
        %v1057 = vpop.f32.mrf.mxu0
        %1058 = vdwg.mxu0
        %v1059 = vmul.f32 %v978, 0.35355338
        %v1060 = vmul.f32 %v1056, 0.35355338
        %v1061 = vsel %vm569, %v1059, -inf
        %1062 = vmax.xlane.f32.xlu0 %v1061
        %v1063 = vpop.xlane.xlu0 %1062
        %v1064 = vsel %vm569, %v1060, -inf
        %1065 = vmax.xlane.f32.xlu0 %v1064
        %v1066 = vpop.xlane.xlu0 %1065
        %v1067 = vsub.f32 %v1059, %v1063
        %v1068 = vsub.f32 %v1060, %v1066
        %v1069 = vmul.f32 %v1067, 1.442695
        %v1070 = vpow.pop %v1069
        %v1071 = vmul.f32 %v1068, 1.442695
        %v1072 = vpow.pop %v1071
        %v1073 = vsel %vm569, %v1070, 0.0
        %1074 = vadd.xlane.f32.xlu0 %v1073
        %v1075 = vpop.xlane.xlu0 %1074
        %v1076 = vsel %vm569, %v1072, 0.0
        %1077 = vadd.xlane.f32.xlu0 %v1076
        %v1078 = vpop.xlane.xlu0 %1077
        %v1079 = vrcp.pop %v1075
        %v1080 = vrcp.pop %v1078
        %v1081 = vmul.f32 %v1075, %v1079
        %v1082 = vmul.f32 %v1078, %v1080
        %v1083 = vsub.f32 2.0, %v1081
        %v1084 = vsub.f32 2.0, %v1082
        %v1085 = vmul.f32 %v1079, %v1083
        %v1086 = vmul.f32 %v1080, %v1084
        %v1087 = vmul.f32 %v1070, %v1085
        %v1088 = vmul.f32 %v1072, %v1086
        %1089 = vrot.lane.b32.xlu0 %v558, 56
        %v1090 = vpop.permute.xlu0 %1089
        %v1093 = vsel %vm569, %v1087, 0
        %1095 = vmatprep.subr.mxu0 0.0
        %1096 = vmatpush1.msra.mxu0 0.0
        %1097 = vmatprep.subr.mxu0 0.0
        %1098 = vmatpush1.msra.mxu0 0.0
        %1099 = vmatprep.subr.mxu0 0.0
        %1100 = vmatpush1.msra.mxu0 0.0
        %1101 = vmatprep.subr.mxu0 0.0
        %1102 = vmatpush1.msra.mxu0 0.0
        %1103 = vmatprep.subr.mxu0 0.0
        %1104 = vmatpush1.msra.mxu0 0.0
        %1105 = vmatprep.subr.mxu0 0.0
        %1106 = vmatpush1.msra.mxu0 0.0
        %1107 = vmatprep.subr.mxu0 0.0
        %1108 = vmatpush1.msra.mxu0 0.0
        %1109 = vmatprep.subr.mxu0 0.0
        %1110 = vmatpush1.msra.mxu0 0.0
        %1111 = vmatprep.subr.mxu0 0.0
        %1112 = vmatpush1.msra.mxu0 0.0
        %1113 = vmatprep.subr.mxu0 0.0
        %1114 = vmatpush1.msra.mxu0 0.0
        %1115 = vmatprep.subr.mxu0 0.0
        %1116 = vmatpush1.msra.mxu0 0.0
        %1117 = vmatprep.subr.mxu0 0.0
        %1118 = vmatpush1.msra.mxu0 0.0
        %1119 = vmatprep.subr.mxu0 0.0
        %1120 = vmatpush1.msra.mxu0 0.0
        %1121 = vmatprep.subr.mxu0 0.0
        %1122 = vmatpush1.msra.mxu0 0.0
        %1123 = vmatprep.subr.mxu0 0.0
        %1124 = vmatpush1.msra.mxu0 0.0
        %1125 = vmatprep.subr.mxu0 0.0
        %1126 = vmatpush1.msra.mxu0 %v1090
        %1127 = vmatprep.subr.mxu0 0.0
        %1128 = vmatpush2.msra.mxu0 0.0
        %1129 = vmatprep.subr.mxu0 0.0
        %1130 = vmatpush2.msra.mxu0 0.0
        %1131 = vmatprep.subr.mxu0 0.0
        %1132 = vmatpush2.msra.mxu0 0.0
        %1133 = vmatprep.subr.mxu0 0.0
        %1134 = vmatpush2.msra.mxu0 0.0
        %1135 = vmatprep.subr.mxu0 0.0
        %1136 = vmatpush2.msra.mxu0 0.0
        %1137 = vmatprep.subr.mxu0 0.0
        %1138 = vmatpush2.msra.mxu0 0.0
        %1139 = vmatprep.subr.mxu0 0.0
        %1140 = vmatpush2.msra.mxu0 0.0
        %1141 = vmatprep.subr.mxu0 0.0
        %1142 = vmatpush2.msra.mxu0 0.0
        %1143 = vmatprep.subr.mxu0 0.0
        %1144 = vmatpush2.msra.mxu0 0.0
        %1145 = vmatprep.subr.mxu0 0.0
        %1146 = vmatpush2.msra.mxu0 0.0
        %1147 = vmatprep.subr.mxu0 0.0
        %1148 = vmatpush2.msra.mxu0 0.0
        %1149 = vmatprep.subr.mxu0 0.0
        %1150 = vmatpush2.msra.mxu0 0.0
        %1151 = vmatprep.subr.mxu0 0.0
        %1152 = vmatpush2.msra.mxu0 0.0
        %1153 = vmatprep.subr.mxu0 0.0
        %1154 = vmatpush2.msra.mxu0 0.0
        %1155 = vmatprep.subr.mxu0 0.0
        %1156 = vmatpush2.msra.mxu0 0.0
        %1157 = vmatprep.subr.mxu0 0.0
        %1158 = vmatpush2.msra.mxu0 0.0
        %1159 = vmatprep.mubr.f32.mxu0 0.0
        %1160 = vmatmul.mubr.f32.gmra.mxu0 %v1093
        %v1161 = vpop.f32.mrf.mxu0
        %v1162 = vadd.f32 0.0, %v1161
        %v1163 = vpop.f32.mrf.mxu0
        %1164 = vdwg.mxu0
        %1165 = vrot.lane.b32.xlu0 %v563, 56
        %v1166 = vpop.permute.xlu0 %1165
        %v1169 = vsel %vm569, %v1088, 0
        %1171 = vmatprep.subr.mxu0 0.0
        %1172 = vmatpush1.msra.mxu0 0.0
        %1173 = vmatprep.subr.mxu0 0.0
        %1174 = vmatpush1.msra.mxu0 0.0
        %1175 = vmatprep.subr.mxu0 0.0
        %1176 = vmatpush1.msra.mxu0 0.0
        %1177 = vmatprep.subr.mxu0 0.0
        %1178 = vmatpush1.msra.mxu0 0.0
        %1179 = vmatprep.subr.mxu0 0.0
        %1180 = vmatpush1.msra.mxu0 0.0
        %1181 = vmatprep.subr.mxu0 0.0
        %1182 = vmatpush1.msra.mxu0 0.0
        %1183 = vmatprep.subr.mxu0 0.0
        %1184 = vmatpush1.msra.mxu0 0.0
        %1185 = vmatprep.subr.mxu0 0.0
        %1186 = vmatpush1.msra.mxu0 0.0
        %1187 = vmatprep.subr.mxu0 0.0
        %1188 = vmatpush1.msra.mxu0 0.0
        %1189 = vmatprep.subr.mxu0 0.0
        %1190 = vmatpush1.msra.mxu0 0.0
        %1191 = vmatprep.subr.mxu0 0.0
        %1192 = vmatpush1.msra.mxu0 0.0
        %1193 = vmatprep.subr.mxu0 0.0
        %1194 = vmatpush1.msra.mxu0 0.0
        %1195 = vmatprep.subr.mxu0 0.0
        %1196 = vmatpush1.msra.mxu0 0.0
        %1197 = vmatprep.subr.mxu0 0.0
        %1198 = vmatpush1.msra.mxu0 0.0
        %1199 = vmatprep.subr.mxu0 0.0
        %1200 = vmatpush1.msra.mxu0 0.0
        %1201 = vmatprep.subr.mxu0 0.0
        %1202 = vmatpush1.msra.mxu0 %v1166
        %1203 = vmatprep.subr.mxu0 0.0
        %1204 = vmatpush2.msra.mxu0 0.0
        %1205 = vmatprep.subr.mxu0 0.0
        %1206 = vmatpush2.msra.mxu0 0.0
        %1207 = vmatprep.subr.mxu0 0.0
        %1208 = vmatpush2.msra.mxu0 0.0
        %1209 = vmatprep.subr.mxu0 0.0
        %1210 = vmatpush2.msra.mxu0 0.0
        %1211 = vmatprep.subr.mxu0 0.0
        %1212 = vmatpush2.msra.mxu0 0.0
        %1213 = vmatprep.subr.mxu0 0.0
        %1214 = vmatpush2.msra.mxu0 0.0
        %1215 = vmatprep.subr.mxu0 0.0
        %1216 = vmatpush2.msra.mxu0 0.0
        %1217 = vmatprep.subr.mxu0 0.0
        %1218 = vmatpush2.msra.mxu0 0.0
        %1219 = vmatprep.subr.mxu0 0.0
        %1220 = vmatpush2.msra.mxu0 0.0
        %1221 = vmatprep.subr.mxu0 0.0
        %1222 = vmatpush2.msra.mxu0 0.0
        %1223 = vmatprep.subr.mxu0 0.0
        %1224 = vmatpush2.msra.mxu0 0.0
        %1225 = vmatprep.subr.mxu0 0.0
        %1226 = vmatpush2.msra.mxu0 0.0
        %1227 = vmatprep.subr.mxu0 0.0
        %1228 = vmatpush2.msra.mxu0 0.0
        %1229 = vmatprep.subr.mxu0 0.0
        %1230 = vmatpush2.msra.mxu0 0.0
        %1231 = vmatprep.subr.mxu0 0.0
        %1232 = vmatpush2.msra.mxu0 0.0
        %1233 = vmatprep.subr.mxu0 0.0
        %1234 = vmatpush2.msra.mxu0 0.0
        %1235 = vmatprep.mubr.f32.mxu0 0.0
        %1236 = vmatmul.mubr.f32.gmra.mxu0 %v1169
        %v1237 = vpop.f32.mrf.mxu0
        %v1238 = vadd.f32 0.0, %v1237
        %v1239 = vpop.f32.mrf.mxu0
        %1240 = vdwg.mxu0
        %1241 = vrot.lane.b32.xlu0 %v558, 112
        %v1242 = vpop.permute.xlu0 %1241
        %1243 = vrot.lane.b32.xlu0 %v558, 80
        %v1244 = vpop.permute.xlu0 %1243
        %v1245 = vsel %vm569, %v1242, 0
        %v1247 = vsel %vm569, %v1244, 0
        %1249 = vmatprep.subr.mxu0 0.0
        %1250 = vmatpush1.xpose.msra.mxu0 0.0
        %1251 = vmatprep.subr.mxu0 0.0
        %1252 = vmatpush1.xpose.msra.mxu0 0.0
        %1253 = vmatprep.subr.mxu0 0.0
        %1254 = vmatpush1.xpose.msra.mxu0 0.0
        %1255 = vmatprep.subr.mxu0 0.0
        %1256 = vmatpush1.xpose.msra.mxu0 0.0
        %1257 = vmatprep.subr.mxu0 0.0
        %1258 = vmatpush1.xpose.msra.mxu0 0.0
        %1259 = vmatprep.subr.mxu0 0.0
        %1260 = vmatpush1.xpose.msra.mxu0 0.0
        %1261 = vmatprep.subr.mxu0 0.0
        %1262 = vmatpush1.xpose.msra.mxu0 0.0
        %1263 = vmatprep.subr.mxu0 0.0
        %1264 = vmatpush1.xpose.msra.mxu0 0.0
        %1265 = vmatprep.subr.mxu0 0.0
        %1266 = vmatpush1.xpose.msra.mxu0 0.0
        %1267 = vmatprep.subr.mxu0 0.0
        %1268 = vmatpush1.xpose.msra.mxu0 0.0
        %1269 = vmatprep.subr.mxu0 0.0
        %1270 = vmatpush1.xpose.msra.mxu0 0.0
        %1271 = vmatprep.subr.mxu0 0.0
        %1272 = vmatpush1.xpose.msra.mxu0 0.0
        %1273 = vmatprep.subr.mxu0 0.0
        %1274 = vmatpush1.xpose.msra.mxu0 0.0
        %1275 = vmatprep.subr.mxu0 0.0
        %1276 = vmatpush1.xpose.msra.mxu0 0.0
        %1277 = vmatprep.subr.mxu0 0.0
        %1278 = vmatpush1.xpose.msra.mxu0 0.0
        %1279 = vmatprep.subr.mxu0 0.0
        %1280 = vmatpush1.xpose.msra.mxu0 %v1247
        %1281 = vmatprep.subr.mxu0 0.0
        %1282 = vmatpush2.xpose.msra.mxu0 0.0
        %1283 = vmatprep.subr.mxu0 0.0
        %1284 = vmatpush2.xpose.msra.mxu0 0.0
        %1285 = vmatprep.subr.mxu0 0.0
        %1286 = vmatpush2.xpose.msra.mxu0 0.0
        %1287 = vmatprep.subr.mxu0 0.0
        %1288 = vmatpush2.xpose.msra.mxu0 0.0
        %1289 = vmatprep.subr.mxu0 0.0
        %1290 = vmatpush2.xpose.msra.mxu0 0.0
        %1291 = vmatprep.subr.mxu0 0.0
        %1292 = vmatpush2.xpose.msra.mxu0 0.0
        %1293 = vmatprep.subr.mxu0 0.0
        %1294 = vmatpush2.xpose.msra.mxu0 0.0
        %1295 = vmatprep.subr.mxu0 0.0
        %1296 = vmatpush2.xpose.msra.mxu0 0.0
        %1297 = vmatprep.subr.mxu0 0.0
        %1298 = vmatpush2.xpose.msra.mxu0 0.0
        %1299 = vmatprep.subr.mxu0 0.0
        %1300 = vmatpush2.xpose.msra.mxu0 0.0
        %1301 = vmatprep.subr.mxu0 0.0
        %1302 = vmatpush2.xpose.msra.mxu0 0.0
        %1303 = vmatprep.subr.mxu0 0.0
        %1304 = vmatpush2.xpose.msra.mxu0 0.0
        %1305 = vmatprep.subr.mxu0 0.0
        %1306 = vmatpush2.xpose.msra.mxu0 0.0
        %1307 = vmatprep.subr.mxu0 0.0
        %1308 = vmatpush2.xpose.msra.mxu0 0.0
        %1309 = vmatprep.subr.mxu0 0.0
        %1310 = vmatpush2.xpose.msra.mxu0 0.0
        %1311 = vmatprep.subr.mxu0 0.0
        %1312 = vmatpush2.xpose.msra.mxu0 0.0
        %1313 = vmatprep.mubr.f32.mxu0 0.0
        %1314 = vmatmul.mubr.f32.gmra.mxu0 %v1245
        %v1315 = vpop.f32.mrf.mxu0
        %v1316 = vadd.f32 0.0, %v1315
        %v1317 = vpop.f32.mrf.mxu0
        %1318 = vdwg.mxu0
        %1319 = vrot.lane.b32.xlu0 %v563, 112
        %v1320 = vpop.permute.xlu0 %1319
        %1321 = vrot.lane.b32.xlu0 %v563, 80
        %v1322 = vpop.permute.xlu0 %1321
        %v1323 = vsel %vm569, %v1320, 0
        %v1325 = vsel %vm569, %v1322, 0
        %1327 = vmatprep.subr.mxu0 0.0
        %1328 = vmatpush1.xpose.msra.mxu0 0.0
        %1329 = vmatprep.subr.mxu0 0.0
        %1330 = vmatpush1.xpose.msra.mxu0 0.0
        %1331 = vmatprep.subr.mxu0 0.0
        %1332 = vmatpush1.xpose.msra.mxu0 0.0
        %1333 = vmatprep.subr.mxu0 0.0
        %1334 = vmatpush1.xpose.msra.mxu0 0.0
        %1335 = vmatprep.subr.mxu0 0.0
        %1336 = vmatpush1.xpose.msra.mxu0 0.0
        %1337 = vmatprep.subr.mxu0 0.0
        %1338 = vmatpush1.xpose.msra.mxu0 0.0
        %1339 = vmatprep.subr.mxu0 0.0
        %1340 = vmatpush1.xpose.msra.mxu0 0.0
        %1341 = vmatprep.subr.mxu0 0.0
        %1342 = vmatpush1.xpose.msra.mxu0 0.0
        %1343 = vmatprep.subr.mxu0 0.0
        %1344 = vmatpush1.xpose.msra.mxu0 0.0
        %1345 = vmatprep.subr.mxu0 0.0
        %1346 = vmatpush1.xpose.msra.mxu0 0.0
        %1347 = vmatprep.subr.mxu0 0.0
        %1348 = vmatpush1.xpose.msra.mxu0 0.0
        %1349 = vmatprep.subr.mxu0 0.0
        %1350 = vmatpush1.xpose.msra.mxu0 0.0
        %1351 = vmatprep.subr.mxu0 0.0
        %1352 = vmatpush1.xpose.msra.mxu0 0.0
        %1353 = vmatprep.subr.mxu0 0.0
        %1354 = vmatpush1.xpose.msra.mxu0 0.0
        %1355 = vmatprep.subr.mxu0 0.0
        %1356 = vmatpush1.xpose.msra.mxu0 0.0
        %1357 = vmatprep.subr.mxu0 0.0
        %1358 = vmatpush1.xpose.msra.mxu0 %v1325
        %1359 = vmatprep.subr.mxu0 0.0
        %1360 = vmatpush2.xpose.msra.mxu0 0.0
        %1361 = vmatprep.subr.mxu0 0.0
        %1362 = vmatpush2.xpose.msra.mxu0 0.0
        %1363 = vmatprep.subr.mxu0 0.0
        %1364 = vmatpush2.xpose.msra.mxu0 0.0
        %1365 = vmatprep.subr.mxu0 0.0
        %1366 = vmatpush2.xpose.msra.mxu0 0.0
        %1367 = vmatprep.subr.mxu0 0.0
        %1368 = vmatpush2.xpose.msra.mxu0 0.0
        %1369 = vmatprep.subr.mxu0 0.0
        %1370 = vmatpush2.xpose.msra.mxu0 0.0
        %1371 = vmatprep.subr.mxu0 0.0
        %1372 = vmatpush2.xpose.msra.mxu0 0.0
        %1373 = vmatprep.subr.mxu0 0.0
        %1374 = vmatpush2.xpose.msra.mxu0 0.0
        %1375 = vmatprep.subr.mxu0 0.0
        %1376 = vmatpush2.xpose.msra.mxu0 0.0
        %1377 = vmatprep.subr.mxu0 0.0
        %1378 = vmatpush2.xpose.msra.mxu0 0.0
        %1379 = vmatprep.subr.mxu0 0.0
        %1380 = vmatpush2.xpose.msra.mxu0 0.0
        %1381 = vmatprep.subr.mxu0 0.0
        %1382 = vmatpush2.xpose.msra.mxu0 0.0
        %1383 = vmatprep.subr.mxu0 0.0
        %1384 = vmatpush2.xpose.msra.mxu0 0.0
        %1385 = vmatprep.subr.mxu0 0.0
        %1386 = vmatpush2.xpose.msra.mxu0 0.0
        %1387 = vmatprep.subr.mxu0 0.0
        %1388 = vmatpush2.xpose.msra.mxu0 0.0
        %1389 = vmatprep.subr.mxu0 0.0
        %1390 = vmatpush2.xpose.msra.mxu0 0.0
        %1391 = vmatprep.mubr.f32.mxu0 0.0
        %1392 = vmatmul.mubr.f32.gmra.mxu0 %v1323
        %v1393 = vpop.f32.mrf.mxu0
        %v1394 = vadd.f32 0.0, %v1393
        %v1395 = vpop.f32.mrf.mxu0
        %1396 = vdwg.mxu0
        %v1397 = vmul.f32 %v1316, 0.35355338
        %v1398 = vmul.f32 %v1394, 0.35355338
        %v1399 = vsel %vm569, %v1397, -inf
        %1400 = vmax.xlane.f32.xlu0 %v1399
        %v1401 = vpop.xlane.xlu0 %1400
        %v1402 = vsel %vm569, %v1398, -inf
        %1403 = vmax.xlane.f32.xlu0 %v1402
        %v1404 = vpop.xlane.xlu0 %1403
        %v1405 = vsub.f32 %v1397, %v1401
        %v1406 = vsub.f32 %v1398, %v1404
        %v1407 = vmul.f32 %v1405, 1.442695
        %v1408 = vpow.pop %v1407
        %v1409 = vmul.f32 %v1406, 1.442695
        %v1410 = vpow.pop %v1409
        %v1411 = vsel %vm569, %v1408, 0.0
        %1412 = vadd.xlane.f32.xlu0 %v1411
        %v1413 = vpop.xlane.xlu0 %1412
        %v1414 = vsel %vm569, %v1410, 0.0
        %1415 = vadd.xlane.f32.xlu0 %v1414
        %v1416 = vpop.xlane.xlu0 %1415
        %v1417 = vrcp.pop %v1413
        %v1418 = vrcp.pop %v1416
        %v1419 = vmul.f32 %v1413, %v1417
        %v1420 = vmul.f32 %v1416, %v1418
        %v1421 = vsub.f32 2.0, %v1419
        %v1422 = vsub.f32 2.0, %v1420
        %v1423 = vmul.f32 %v1417, %v1421
        %v1424 = vmul.f32 %v1418, %v1422
        %v1425 = vmul.f32 %v1408, %v1423
        %v1426 = vmul.f32 %v1410, %v1424
        %1427 = vrot.lane.b32.xlu0 %v558, 48
        %v1428 = vpop.permute.xlu0 %1427
        %v1431 = vsel %vm569, %v1425, 0
        %1433 = vmatprep.subr.mxu0 0.0
        %1434 = vmatpush1.msra.mxu0 0.0
        %1435 = vmatprep.subr.mxu0 0.0
        %1436 = vmatpush1.msra.mxu0 0.0
        %1437 = vmatprep.subr.mxu0 0.0
        %1438 = vmatpush1.msra.mxu0 0.0
        %1439 = vmatprep.subr.mxu0 0.0
        %1440 = vmatpush1.msra.mxu0 0.0
        %1441 = vmatprep.subr.mxu0 0.0
        %1442 = vmatpush1.msra.mxu0 0.0
        %1443 = vmatprep.subr.mxu0 0.0
        %1444 = vmatpush1.msra.mxu0 0.0
        %1445 = vmatprep.subr.mxu0 0.0
        %1446 = vmatpush1.msra.mxu0 0.0
        %1447 = vmatprep.subr.mxu0 0.0
        %1448 = vmatpush1.msra.mxu0 0.0
        %1449 = vmatprep.subr.mxu0 0.0
        %1450 = vmatpush1.msra.mxu0 0.0
        %1451 = vmatprep.subr.mxu0 0.0
        %1452 = vmatpush1.msra.mxu0 0.0
        %1453 = vmatprep.subr.mxu0 0.0
        %1454 = vmatpush1.msra.mxu0 0.0
        %1455 = vmatprep.subr.mxu0 0.0
        %1456 = vmatpush1.msra.mxu0 0.0
        %1457 = vmatprep.subr.mxu0 0.0
        %1458 = vmatpush1.msra.mxu0 0.0
        %1459 = vmatprep.subr.mxu0 0.0
        %1460 = vmatpush1.msra.mxu0 0.0
        %1461 = vmatprep.subr.mxu0 0.0
        %1462 = vmatpush1.msra.mxu0 0.0
        %1463 = vmatprep.subr.mxu0 0.0
        %1464 = vmatpush1.msra.mxu0 %v1428
        %1465 = vmatprep.subr.mxu0 0.0
        %1466 = vmatpush2.msra.mxu0 0.0
        %1467 = vmatprep.subr.mxu0 0.0
        %1468 = vmatpush2.msra.mxu0 0.0
        %1469 = vmatprep.subr.mxu0 0.0
        %1470 = vmatpush2.msra.mxu0 0.0
        %1471 = vmatprep.subr.mxu0 0.0
        %1472 = vmatpush2.msra.mxu0 0.0
        %1473 = vmatprep.subr.mxu0 0.0
        %1474 = vmatpush2.msra.mxu0 0.0
        %1475 = vmatprep.subr.mxu0 0.0
        %1476 = vmatpush2.msra.mxu0 0.0
        %1477 = vmatprep.subr.mxu0 0.0
        %1478 = vmatpush2.msra.mxu0 0.0
        %1479 = vmatprep.subr.mxu0 0.0
        %1480 = vmatpush2.msra.mxu0 0.0
        %1481 = vmatprep.subr.mxu0 0.0
        %1482 = vmatpush2.msra.mxu0 0.0
        %1483 = vmatprep.subr.mxu0 0.0
        %1484 = vmatpush2.msra.mxu0 0.0
        %1485 = vmatprep.subr.mxu0 0.0
        %1486 = vmatpush2.msra.mxu0 0.0
        %1487 = vmatprep.subr.mxu0 0.0
        %1488 = vmatpush2.msra.mxu0 0.0
        %1489 = vmatprep.subr.mxu0 0.0
        %1490 = vmatpush2.msra.mxu0 0.0
        %1491 = vmatprep.subr.mxu0 0.0
        %1492 = vmatpush2.msra.mxu0 0.0
        %1493 = vmatprep.subr.mxu0 0.0
        %1494 = vmatpush2.msra.mxu0 0.0
        %1495 = vmatprep.subr.mxu0 0.0
        %1496 = vmatpush2.msra.mxu0 0.0
        %1497 = vmatprep.mubr.f32.mxu0 0.0
        %1498 = vmatmul.mubr.f32.gmra.mxu0 %v1431
        %v1499 = vpop.f32.mrf.mxu0
        %v1500 = vadd.f32 0.0, %v1499
        %v1501 = vpop.f32.mrf.mxu0
        %1502 = vdwg.mxu0
        %1503 = vrot.lane.b32.xlu0 %v563, 48
        %v1504 = vpop.permute.xlu0 %1503
        %v1507 = vsel %vm569, %v1426, 0
        %1509 = vmatprep.subr.mxu0 0.0
        %1510 = vmatpush1.msra.mxu0 0.0
        %1511 = vmatprep.subr.mxu0 0.0
        %1512 = vmatpush1.msra.mxu0 0.0
        %1513 = vmatprep.subr.mxu0 0.0
        %1514 = vmatpush1.msra.mxu0 0.0
        %1515 = vmatprep.subr.mxu0 0.0
        %1516 = vmatpush1.msra.mxu0 0.0
        %1517 = vmatprep.subr.mxu0 0.0
        %1518 = vmatpush1.msra.mxu0 0.0
        %1519 = vmatprep.subr.mxu0 0.0
        %1520 = vmatpush1.msra.mxu0 0.0
        %1521 = vmatprep.subr.mxu0 0.0
        %1522 = vmatpush1.msra.mxu0 0.0
        %1523 = vmatprep.subr.mxu0 0.0
        %1524 = vmatpush1.msra.mxu0 0.0
        %1525 = vmatprep.subr.mxu0 0.0
        %1526 = vmatpush1.msra.mxu0 0.0
        %1527 = vmatprep.subr.mxu0 0.0
        %1528 = vmatpush1.msra.mxu0 0.0
        %1529 = vmatprep.subr.mxu0 0.0
        %1530 = vmatpush1.msra.mxu0 0.0
        %1531 = vmatprep.subr.mxu0 0.0
        %1532 = vmatpush1.msra.mxu0 0.0
        %1533 = vmatprep.subr.mxu0 0.0
        %1534 = vmatpush1.msra.mxu0 0.0
        %1535 = vmatprep.subr.mxu0 0.0
        %1536 = vmatpush1.msra.mxu0 0.0
        %1537 = vmatprep.subr.mxu0 0.0
        %1538 = vmatpush1.msra.mxu0 0.0
        %1539 = vmatprep.subr.mxu0 0.0
        %1540 = vmatpush1.msra.mxu0 %v1504
        %1541 = vmatprep.subr.mxu0 0.0
        %1542 = vmatpush2.msra.mxu0 0.0
        %1543 = vmatprep.subr.mxu0 0.0
        %1544 = vmatpush2.msra.mxu0 0.0
        %1545 = vmatprep.subr.mxu0 0.0
        %1546 = vmatpush2.msra.mxu0 0.0
        %1547 = vmatprep.subr.mxu0 0.0
        %1548 = vmatpush2.msra.mxu0 0.0
        %1549 = vmatprep.subr.mxu0 0.0
        %1550 = vmatpush2.msra.mxu0 0.0
        %1551 = vmatprep.subr.mxu0 0.0
        %1552 = vmatpush2.msra.mxu0 0.0
        %1553 = vmatprep.subr.mxu0 0.0
        %1554 = vmatpush2.msra.mxu0 0.0
        %1555 = vmatprep.subr.mxu0 0.0
        %1556 = vmatpush2.msra.mxu0 0.0
        %1557 = vmatprep.subr.mxu0 0.0
        %1558 = vmatpush2.msra.mxu0 0.0
        %1559 = vmatprep.subr.mxu0 0.0
        %1560 = vmatpush2.msra.mxu0 0.0
        %1561 = vmatprep.subr.mxu0 0.0
        %1562 = vmatpush2.msra.mxu0 0.0
        %1563 = vmatprep.subr.mxu0 0.0
        %1564 = vmatpush2.msra.mxu0 0.0
        %1565 = vmatprep.subr.mxu0 0.0
        %1566 = vmatpush2.msra.mxu0 0.0
        %1567 = vmatprep.subr.mxu0 0.0
        %1568 = vmatpush2.msra.mxu0 0.0
        %1569 = vmatprep.subr.mxu0 0.0
        %1570 = vmatpush2.msra.mxu0 0.0
        %1571 = vmatprep.subr.mxu0 0.0
        %1572 = vmatpush2.msra.mxu0 0.0
        %1573 = vmatprep.mubr.f32.mxu0 0.0
        %1574 = vmatmul.mubr.f32.gmra.mxu0 %v1507
        %v1575 = vpop.f32.mrf.mxu0
        %v1576 = vadd.f32 0.0, %v1575
        %v1577 = vpop.f32.mrf.mxu0
        %1578 = vdwg.mxu0
        %1579 = vrot.lane.b32.xlu0 %v558, 104
        %v1580 = vpop.permute.xlu0 %1579
        %1581 = vrot.lane.b32.xlu0 %v558, 72
        %v1582 = vpop.permute.xlu0 %1581
        %v1583 = vsel %vm569, %v1580, 0
        %v1585 = vsel %vm569, %v1582, 0
        %1587 = vmatprep.subr.mxu0 0.0
        %1588 = vmatpush1.xpose.msra.mxu0 0.0
        %1589 = vmatprep.subr.mxu0 0.0
        %1590 = vmatpush1.xpose.msra.mxu0 0.0
        %1591 = vmatprep.subr.mxu0 0.0
        %1592 = vmatpush1.xpose.msra.mxu0 0.0
        %1593 = vmatprep.subr.mxu0 0.0
        %1594 = vmatpush1.xpose.msra.mxu0 0.0
        %1595 = vmatprep.subr.mxu0 0.0
        %1596 = vmatpush1.xpose.msra.mxu0 0.0
        %1597 = vmatprep.subr.mxu0 0.0
        %1598 = vmatpush1.xpose.msra.mxu0 0.0
        %1599 = vmatprep.subr.mxu0 0.0
        %1600 = vmatpush1.xpose.msra.mxu0 0.0
        %1601 = vmatprep.subr.mxu0 0.0
        %1602 = vmatpush1.xpose.msra.mxu0 0.0
        %1603 = vmatprep.subr.mxu0 0.0
        %1604 = vmatpush1.xpose.msra.mxu0 0.0
        %1605 = vmatprep.subr.mxu0 0.0
        %1606 = vmatpush1.xpose.msra.mxu0 0.0
        %1607 = vmatprep.subr.mxu0 0.0
        %1608 = vmatpush1.xpose.msra.mxu0 0.0
        %1609 = vmatprep.subr.mxu0 0.0
        %1610 = vmatpush1.xpose.msra.mxu0 0.0
        %1611 = vmatprep.subr.mxu0 0.0
        %1612 = vmatpush1.xpose.msra.mxu0 0.0
        %1613 = vmatprep.subr.mxu0 0.0
        %1614 = vmatpush1.xpose.msra.mxu0 0.0
        %1615 = vmatprep.subr.mxu0 0.0
        %1616 = vmatpush1.xpose.msra.mxu0 0.0
        %1617 = vmatprep.subr.mxu0 0.0
        %1618 = vmatpush1.xpose.msra.mxu0 %v1585
        %1619 = vmatprep.subr.mxu0 0.0
        %1620 = vmatpush2.xpose.msra.mxu0 0.0
        %1621 = vmatprep.subr.mxu0 0.0
        %1622 = vmatpush2.xpose.msra.mxu0 0.0
        %1623 = vmatprep.subr.mxu0 0.0
        %1624 = vmatpush2.xpose.msra.mxu0 0.0
        %1625 = vmatprep.subr.mxu0 0.0
        %1626 = vmatpush2.xpose.msra.mxu0 0.0
        %1627 = vmatprep.subr.mxu0 0.0
        %1628 = vmatpush2.xpose.msra.mxu0 0.0
        %1629 = vmatprep.subr.mxu0 0.0
        %1630 = vmatpush2.xpose.msra.mxu0 0.0
        %1631 = vmatprep.subr.mxu0 0.0
        %1632 = vmatpush2.xpose.msra.mxu0 0.0
        %1633 = vmatprep.subr.mxu0 0.0
        %1634 = vmatpush2.xpose.msra.mxu0 0.0
        %1635 = vmatprep.subr.mxu0 0.0
        %1636 = vmatpush2.xpose.msra.mxu0 0.0
        %1637 = vmatprep.subr.mxu0 0.0
        %1638 = vmatpush2.xpose.msra.mxu0 0.0
        %1639 = vmatprep.subr.mxu0 0.0
        %1640 = vmatpush2.xpose.msra.mxu0 0.0
        %1641 = vmatprep.subr.mxu0 0.0
        %1642 = vmatpush2.xpose.msra.mxu0 0.0
        %1643 = vmatprep.subr.mxu0 0.0
        %1644 = vmatpush2.xpose.msra.mxu0 0.0
        %1645 = vmatprep.subr.mxu0 0.0
        %1646 = vmatpush2.xpose.msra.mxu0 0.0
        %1647 = vmatprep.subr.mxu0 0.0
        %1648 = vmatpush2.xpose.msra.mxu0 0.0
        %1649 = vmatprep.subr.mxu0 0.0
        %1650 = vmatpush2.xpose.msra.mxu0 0.0
        %1651 = vmatprep.mubr.f32.mxu0 0.0
        %1652 = vmatmul.mubr.f32.gmra.mxu0 %v1583
        %v1653 = vpop.f32.mrf.mxu0
        %v1654 = vadd.f32 0.0, %v1653
        %v1655 = vpop.f32.mrf.mxu0
        %1656 = vdwg.mxu0
        %1657 = vrot.lane.b32.xlu0 %v563, 104
        %v1658 = vpop.permute.xlu0 %1657
        %1659 = vrot.lane.b32.xlu0 %v563, 72
        %v1660 = vpop.permute.xlu0 %1659
        %v1661 = vsel %vm569, %v1658, 0
        %v1663 = vsel %vm569, %v1660, 0
        %1665 = vmatprep.subr.mxu0 0.0
        %1666 = vmatpush1.xpose.msra.mxu0 0.0
        %1667 = vmatprep.subr.mxu0 0.0
        %1668 = vmatpush1.xpose.msra.mxu0 0.0
        %1669 = vmatprep.subr.mxu0 0.0
        %1670 = vmatpush1.xpose.msra.mxu0 0.0
        %1671 = vmatprep.subr.mxu0 0.0
        %1672 = vmatpush1.xpose.msra.mxu0 0.0
        %1673 = vmatprep.subr.mxu0 0.0
        %1674 = vmatpush1.xpose.msra.mxu0 0.0
        %1675 = vmatprep.subr.mxu0 0.0
        %1676 = vmatpush1.xpose.msra.mxu0 0.0
        %1677 = vmatprep.subr.mxu0 0.0
        %1678 = vmatpush1.xpose.msra.mxu0 0.0
        %1679 = vmatprep.subr.mxu0 0.0
        %1680 = vmatpush1.xpose.msra.mxu0 0.0
        %1681 = vmatprep.subr.mxu0 0.0
        %1682 = vmatpush1.xpose.msra.mxu0 0.0
        %1683 = vmatprep.subr.mxu0 0.0
        %1684 = vmatpush1.xpose.msra.mxu0 0.0
        %1685 = vmatprep.subr.mxu0 0.0
        %1686 = vmatpush1.xpose.msra.mxu0 0.0
        %1687 = vmatprep.subr.mxu0 0.0
        %1688 = vmatpush1.xpose.msra.mxu0 0.0
        %1689 = vmatprep.subr.mxu0 0.0
        %1690 = vmatpush1.xpose.msra.mxu0 0.0
        %1691 = vmatprep.subr.mxu0 0.0
        %1692 = vmatpush1.xpose.msra.mxu0 0.0
        %1693 = vmatprep.subr.mxu0 0.0
        %1694 = vmatpush1.xpose.msra.mxu0 0.0
        %1695 = vmatprep.subr.mxu0 0.0
        %1696 = vmatpush1.xpose.msra.mxu0 %v1663
        %1697 = vmatprep.subr.mxu0 0.0
        %1698 = vmatpush2.xpose.msra.mxu0 0.0
        %1699 = vmatprep.subr.mxu0 0.0
        %1700 = vmatpush2.xpose.msra.mxu0 0.0
        %1701 = vmatprep.subr.mxu0 0.0
        %1702 = vmatpush2.xpose.msra.mxu0 0.0
        %1703 = vmatprep.subr.mxu0 0.0
        %1704 = vmatpush2.xpose.msra.mxu0 0.0
        %1705 = vmatprep.subr.mxu0 0.0
        %1706 = vmatpush2.xpose.msra.mxu0 0.0
        %1707 = vmatprep.subr.mxu0 0.0
        %1708 = vmatpush2.xpose.msra.mxu0 0.0
        %1709 = vmatprep.subr.mxu0 0.0
        %1710 = vmatpush2.xpose.msra.mxu0 0.0
        %1711 = vmatprep.subr.mxu0 0.0
        %1712 = vmatpush2.xpose.msra.mxu0 0.0
        %1713 = vmatprep.subr.mxu0 0.0
        %1714 = vmatpush2.xpose.msra.mxu0 0.0
        %1715 = vmatprep.subr.mxu0 0.0
        %1716 = vmatpush2.xpose.msra.mxu0 0.0
        %1717 = vmatprep.subr.mxu0 0.0
        %1718 = vmatpush2.xpose.msra.mxu0 0.0
        %1719 = vmatprep.subr.mxu0 0.0
        %1720 = vmatpush2.xpose.msra.mxu0 0.0
        %1721 = vmatprep.subr.mxu0 0.0
        %1722 = vmatpush2.xpose.msra.mxu0 0.0
        %1723 = vmatprep.subr.mxu0 0.0
        %1724 = vmatpush2.xpose.msra.mxu0 0.0
        %1725 = vmatprep.subr.mxu0 0.0
        %1726 = vmatpush2.xpose.msra.mxu0 0.0
        %1727 = vmatprep.subr.mxu0 0.0
        %1728 = vmatpush2.xpose.msra.mxu0 0.0
        %1729 = vmatprep.mubr.f32.mxu0 0.0
        %1730 = vmatmul.mubr.f32.gmra.mxu0 %v1661
        %v1731 = vpop.f32.mrf.mxu0
        %v1732 = vadd.f32 0.0, %v1731
        %v1733 = vpop.f32.mrf.mxu0
        %1734 = vdwg.mxu0
        %v1735 = vmul.f32 %v1654, 0.35355338
        %v1736 = vmul.f32 %v1732, 0.35355338
        %v1737 = vsel %vm569, %v1735, -inf
        %1738 = vmax.xlane.f32.xlu0 %v1737
        %v1739 = vpop.xlane.xlu0 %1738
        %v1740 = vsel %vm569, %v1736, -inf
        %1741 = vmax.xlane.f32.xlu0 %v1740
        %v1742 = vpop.xlane.xlu0 %1741
        %v1743 = vsub.f32 %v1735, %v1739
        %v1744 = vsub.f32 %v1736, %v1742
        %v1745 = vmul.f32 %v1743, 1.442695
        %v1746 = vpow.pop %v1745
        %v1747 = vmul.f32 %v1744, 1.442695
        %v1748 = vpow.pop %v1747
        %v1749 = vsel %vm569, %v1746, 0.0
        %1750 = vadd.xlane.f32.xlu0 %v1749
        %v1751 = vpop.xlane.xlu0 %1750
        %v1752 = vsel %vm569, %v1748, 0.0
        %1753 = vadd.xlane.f32.xlu0 %v1752
        %v1754 = vpop.xlane.xlu0 %1753
        %v1755 = vrcp.pop %v1751
        %v1756 = vrcp.pop %v1754
        %v1757 = vmul.f32 %v1751, %v1755
        %v1758 = vmul.f32 %v1754, %v1756
        %v1759 = vsub.f32 2.0, %v1757
        %v1760 = vsub.f32 2.0, %v1758
        %v1761 = vmul.f32 %v1755, %v1759
        %v1762 = vmul.f32 %v1756, %v1760
        %v1763 = vmul.f32 %v1746, %v1761
        %v1764 = vmul.f32 %v1748, %v1762
        %1765 = vrot.lane.b32.xlu0 %v558, 40
        %v1766 = vpop.permute.xlu0 %1765
        %v1769 = vsel %vm569, %v1763, 0
        %1771 = vmatprep.subr.mxu0 0.0
        %1772 = vmatpush1.msra.mxu0 0.0
        %1773 = vmatprep.subr.mxu0 0.0
        %1774 = vmatpush1.msra.mxu0 0.0
        %1775 = vmatprep.subr.mxu0 0.0
        %1776 = vmatpush1.msra.mxu0 0.0
        %1777 = vmatprep.subr.mxu0 0.0
        %1778 = vmatpush1.msra.mxu0 0.0
        %1779 = vmatprep.subr.mxu0 0.0
        %1780 = vmatpush1.msra.mxu0 0.0
        %1781 = vmatprep.subr.mxu0 0.0
        %1782 = vmatpush1.msra.mxu0 0.0
        %1783 = vmatprep.subr.mxu0 0.0
        %1784 = vmatpush1.msra.mxu0 0.0
        %1785 = vmatprep.subr.mxu0 0.0
        %1786 = vmatpush1.msra.mxu0 0.0
        %1787 = vmatprep.subr.mxu0 0.0
        %1788 = vmatpush1.msra.mxu0 0.0
        %1789 = vmatprep.subr.mxu0 0.0
        %1790 = vmatpush1.msra.mxu0 0.0
        %1791 = vmatprep.subr.mxu0 0.0
        %1792 = vmatpush1.msra.mxu0 0.0
        %1793 = vmatprep.subr.mxu0 0.0
        %1794 = vmatpush1.msra.mxu0 0.0
        %1795 = vmatprep.subr.mxu0 0.0
        %1796 = vmatpush1.msra.mxu0 0.0
        %1797 = vmatprep.subr.mxu0 0.0
        %1798 = vmatpush1.msra.mxu0 0.0
        %1799 = vmatprep.subr.mxu0 0.0
        %1800 = vmatpush1.msra.mxu0 0.0
        %1801 = vmatprep.subr.mxu0 0.0
        %1802 = vmatpush1.msra.mxu0 %v1766
        %1803 = vmatprep.subr.mxu0 0.0
        %1804 = vmatpush2.msra.mxu0 0.0
        %1805 = vmatprep.subr.mxu0 0.0
        %1806 = vmatpush2.msra.mxu0 0.0
        %1807 = vmatprep.subr.mxu0 0.0
        %1808 = vmatpush2.msra.mxu0 0.0
        %1809 = vmatprep.subr.mxu0 0.0
        %1810 = vmatpush2.msra.mxu0 0.0
        %1811 = vmatprep.subr.mxu0 0.0
        %1812 = vmatpush2.msra.mxu0 0.0
        %1813 = vmatprep.subr.mxu0 0.0
        %1814 = vmatpush2.msra.mxu0 0.0
        %1815 = vmatprep.subr.mxu0 0.0
        %1816 = vmatpush2.msra.mxu0 0.0
        %1817 = vmatprep.subr.mxu0 0.0
        %1818 = vmatpush2.msra.mxu0 0.0
        %1819 = vmatprep.subr.mxu0 0.0
        %1820 = vmatpush2.msra.mxu0 0.0
        %1821 = vmatprep.subr.mxu0 0.0
        %1822 = vmatpush2.msra.mxu0 0.0
        %1823 = vmatprep.subr.mxu0 0.0
        %1824 = vmatpush2.msra.mxu0 0.0
        %1825 = vmatprep.subr.mxu0 0.0
        %1826 = vmatpush2.msra.mxu0 0.0
        %1827 = vmatprep.subr.mxu0 0.0
        %1828 = vmatpush2.msra.mxu0 0.0
        %1829 = vmatprep.subr.mxu0 0.0
        %1830 = vmatpush2.msra.mxu0 0.0
        %1831 = vmatprep.subr.mxu0 0.0
        %1832 = vmatpush2.msra.mxu0 0.0
        %1833 = vmatprep.subr.mxu0 0.0
        %1834 = vmatpush2.msra.mxu0 0.0
        %1835 = vmatprep.mubr.f32.mxu0 0.0
        %1836 = vmatmul.mubr.f32.gmra.mxu0 %v1769
        %v1837 = vpop.f32.mrf.mxu0
        %v1838 = vadd.f32 0.0, %v1837
        %v1839 = vpop.f32.mrf.mxu0
        %1840 = vdwg.mxu0
        %1841 = vrot.lane.b32.xlu0 %v563, 40
        %v1842 = vpop.permute.xlu0 %1841
        %v1845 = vsel %vm569, %v1764, 0
        %1847 = vmatprep.subr.mxu0 0.0
        %1848 = vmatpush1.msra.mxu0 0.0
        %1849 = vmatprep.subr.mxu0 0.0
        %1850 = vmatpush1.msra.mxu0 0.0
        %1851 = vmatprep.subr.mxu0 0.0
        %1852 = vmatpush1.msra.mxu0 0.0
        %1853 = vmatprep.subr.mxu0 0.0
        %1854 = vmatpush1.msra.mxu0 0.0
        %1855 = vmatprep.subr.mxu0 0.0
        %1856 = vmatpush1.msra.mxu0 0.0
        %1857 = vmatprep.subr.mxu0 0.0
        %1858 = vmatpush1.msra.mxu0 0.0
        %1859 = vmatprep.subr.mxu0 0.0
        %1860 = vmatpush1.msra.mxu0 0.0
        %1861 = vmatprep.subr.mxu0 0.0
        %1862 = vmatpush1.msra.mxu0 0.0
        %1863 = vmatprep.subr.mxu0 0.0
        %1864 = vmatpush1.msra.mxu0 0.0
        %1865 = vmatprep.subr.mxu0 0.0
        %1866 = vmatpush1.msra.mxu0 0.0
        %1867 = vmatprep.subr.mxu0 0.0
        %1868 = vmatpush1.msra.mxu0 0.0
        %1869 = vmatprep.subr.mxu0 0.0
        %1870 = vmatpush1.msra.mxu0 0.0
        %1871 = vmatprep.subr.mxu0 0.0
        %1872 = vmatpush1.msra.mxu0 0.0
        %1873 = vmatprep.subr.mxu0 0.0
        %1874 = vmatpush1.msra.mxu0 0.0
        %1875 = vmatprep.subr.mxu0 0.0
        %1876 = vmatpush1.msra.mxu0 0.0
        %1877 = vmatprep.subr.mxu0 0.0
        %1878 = vmatpush1.msra.mxu0 %v1842
        %1879 = vmatprep.subr.mxu0 0.0
        %1880 = vmatpush2.msra.mxu0 0.0
        %1881 = vmatprep.subr.mxu0 0.0
        %1882 = vmatpush2.msra.mxu0 0.0
        %1883 = vmatprep.subr.mxu0 0.0
        %1884 = vmatpush2.msra.mxu0 0.0
        %1885 = vmatprep.subr.mxu0 0.0
        %1886 = vmatpush2.msra.mxu0 0.0
        %1887 = vmatprep.subr.mxu0 0.0
        %1888 = vmatpush2.msra.mxu0 0.0
        %1889 = vmatprep.subr.mxu0 0.0
        %1890 = vmatpush2.msra.mxu0 0.0
        %1891 = vmatprep.subr.mxu0 0.0
        %1892 = vmatpush2.msra.mxu0 0.0
        %1893 = vmatprep.subr.mxu0 0.0
        %1894 = vmatpush2.msra.mxu0 0.0
        %1895 = vmatprep.subr.mxu0 0.0
        %1896 = vmatpush2.msra.mxu0 0.0
        %1897 = vmatprep.subr.mxu0 0.0
        %1898 = vmatpush2.msra.mxu0 0.0
        %1899 = vmatprep.subr.mxu0 0.0
        %1900 = vmatpush2.msra.mxu0 0.0
        %1901 = vmatprep.subr.mxu0 0.0
        %1902 = vmatpush2.msra.mxu0 0.0
        %1903 = vmatprep.subr.mxu0 0.0
        %1904 = vmatpush2.msra.mxu0 0.0
        %1905 = vmatprep.subr.mxu0 0.0
        %1906 = vmatpush2.msra.mxu0 0.0
        %1907 = vmatprep.subr.mxu0 0.0
        %1908 = vmatpush2.msra.mxu0 0.0
        %1909 = vmatprep.subr.mxu0 0.0
        %1910 = vmatpush2.msra.mxu0 0.0
        %1911 = vmatprep.mubr.f32.mxu0 0.0
        %1912 = vmatmul.mubr.f32.gmra.mxu0 %v1845
        %v1913 = vpop.f32.mrf.mxu0
        %v1914 = vadd.f32 0.0, %v1913
        %v1915 = vpop.f32.mrf.mxu0
        %1916 = vdwg.mxu0
        %1917 = vst.msk [vmem:[%s431] sm:$0xff] %vm569, %v749
        %1918 = vst.msk [vmem:[%s431 + $0x8] sm:$0xff] %vm569, %v1087
        %1919 = vst.msk [vmem:[%s431 + $0x10] sm:$0xff] %vm569, %v1425
        %1920 = vst.msk [vmem:[%s431 + $0x18] sm:$0xff] %vm569, %v1763
        %1921 = vst.msk [vmem:[%s431 + $0x20] sm:$0xff] %vm569, %v750
        %1922 = vst.msk [vmem:[%s431 + $0x28] sm:$0xff] %vm569, %v1088
        %1923 = vst.msk [vmem:[%s431 + $0x30] sm:$0xff] %vm569, %v1426
        %1924 = vst.msk [vmem:[%s431 + $0x38] sm:$0xff] %vm569, %v1764
        %1927 = vrot.lane.b32.xlu0 %v1162, 8
        %v1928 = vpop.permute.xlu0 %1927
        %1929 = vrot.lane.b32.xlu0 %v1238, 8
        %v1930 = vpop.permute.xlu0 %1929
        %1935 = vrot.lane.b32.xlu0 %v1500, 16
        %v1936 = vpop.permute.xlu0 %1935
        %1937 = vrot.lane.b32.xlu0 %v1576, 16
        %v1938 = vpop.permute.xlu0 %1937
        %1943 = vrot.lane.b32.xlu0 %v1838, 24
        %v1944 = vpop.permute.xlu0 %1943
        %1945 = vrot.lane.b32.xlu0 %v1914, 24
        %v1946 = vpop.permute.xlu0 %1945
        %v1949 = vsel %vm569, %v824, %v1928
        %v1950 = vsel %vm569, %v900, %v1930
        %vm1951 = vcmask 130048
        %v1952 = vsel %vm1951, %v1949, %v1936
        %v1953 = vsel %vm1951, %v1950, %v1938
        %vm1954 = vcmask 195584
        %v1955 = vsel %vm1954, %v1952, %v1944
        %v1956 = vsel %vm1954, %v1953, %v1946
        %v1957 = vld [vmem:[%s461] sm:$0x3f]
        %v1958 = vld [vmem:[%s444] sm:$0xff]
        %v1959 = vld [vmem:[%s444 + $0x8] sm:$0xff]
        %v1960 = vld [vmem:[%s444 + $0x10] sm:$0xff]
        %v1961 = vld [vmem:[%s444 + $0x18] sm:$0xff]
        %v1962 = vlaneseq
        %v1963 = vshrl.u32 %v1962, 7
        %v1964 = vsub.s32 0, %v1963
        %v1965 = vrot.slane %v1957, %v1964
        %v1967 = vsel %vm484, %v1955, 0
        %v1970 = vsel %vm484, %v1956, 0
        %1972 = vmatprep.subr.mxu0 0.0
        %1973 = vmatpush1.msra.mxu0 0.0
        %1974 = vmatprep.subr.mxu0 0.0
        %1975 = vmatpush1.msra.mxu0 0.0
        %1976 = vmatprep.subr.mxu0 0.0
        %1977 = vmatpush1.msra.mxu0 0.0
        %1978 = vmatprep.subr.mxu0 0.0
        %1979 = vmatpush1.msra.mxu0 0.0
        %1980 = vmatprep.subr.mxu0 0.0
        %1981 = vmatpush1.msra.mxu0 0.0
        %1982 = vmatprep.subr.mxu0 0.0
        %1983 = vmatpush1.msra.mxu0 0.0
        %1984 = vmatprep.subr.mxu0 0.0
        %1985 = vmatpush1.msra.mxu0 0.0
        %1986 = vmatprep.subr.mxu0 0.0
        %1987 = vmatpush1.msra.mxu0 0.0
        %1988 = vmatprep.subr.mxu0 0.0
        %1989 = vmatpush1.msra.mxu0 0.0
        %1990 = vmatprep.subr.mxu0 0.0
        %1991 = vmatpush1.msra.mxu0 0.0
        %1992 = vmatprep.subr.mxu0 0.0
        %1993 = vmatpush1.msra.mxu0 0.0
        %1994 = vmatprep.subr.mxu0 0.0
        %1995 = vmatpush1.msra.mxu0 0.0
        %1996 = vmatprep.subr.mxu0 0.0
        %1997 = vmatpush1.msra.mxu0 %v1961
        %1998 = vmatprep.subr.mxu0 0.0
        %1999 = vmatpush1.msra.mxu0 %v1960
        %2000 = vmatprep.subr.mxu0 0.0
        %2001 = vmatpush1.msra.mxu0 %v1959
        %2002 = vmatprep.subr.mxu0 0.0
        %2003 = vmatpush1.msra.mxu0 %v1958
        %2004 = vmatprep.subr.mxu0 0.0
        %2005 = vmatpush2.msra.mxu0 0.0
        %2006 = vmatprep.subr.mxu0 0.0
        %2007 = vmatpush2.msra.mxu0 0.0
        %2008 = vmatprep.subr.mxu0 0.0
        %2009 = vmatpush2.msra.mxu0 0.0
        %2010 = vmatprep.subr.mxu0 0.0
        %2011 = vmatpush2.msra.mxu0 0.0
        %2012 = vmatprep.subr.mxu0 0.0
        %2013 = vmatpush2.msra.mxu0 0.0
        %2014 = vmatprep.subr.mxu0 0.0
        %2015 = vmatpush2.msra.mxu0 0.0
        %2016 = vmatprep.subr.mxu0 0.0
        %2017 = vmatpush2.msra.mxu0 0.0
        %2018 = vmatprep.subr.mxu0 0.0
        %2019 = vmatpush2.msra.mxu0 0.0
        %2020 = vmatprep.subr.mxu0 0.0
        %2021 = vmatpush2.msra.mxu0 0.0
        %2022 = vmatprep.subr.mxu0 0.0
        %2023 = vmatpush2.msra.mxu0 0.0
        %2024 = vmatprep.subr.mxu0 0.0
        %2025 = vmatpush2.msra.mxu0 0.0
        %2026 = vmatprep.subr.mxu0 0.0
        %2027 = vmatpush2.msra.mxu0 0.0
        %2028 = vmatprep.subr.mxu0 0.0
        %2029 = vmatpush2.msra.mxu0 0.0
        %2030 = vmatprep.subr.mxu0 0.0
        %2031 = vmatpush2.msra.mxu0 0.0
        %2032 = vmatprep.subr.mxu0 0.0
        %2033 = vmatpush2.msra.mxu0 0.0
        %2034 = vmatprep.subr.mxu0 0.0
        %2035 = vmatpush2.msra.mxu0 0.0
        %2036 = vmatprep.mubr.f32.mxu0 0.0
        %2037 = vmatmul.mubr.f32.gmra.mxu0 %v1967
        %v2038 = vpop.f32.mrf.mxu0
        %v2039 = vadd.f32 %v1965, %v2038
        %v2040 = vpop.f32.mrf.mxu0
        %2041 = vmatprep.mubr.f32.mxu0 0.0
        %2042 = vmatmul.mubr.f32.gmra.mxu0 %v1970
        %v2043 = vpop.f32.mrf.mxu0
        %v2044 = vadd.f32 %v1965, %v2043
        %v2045 = vpop.f32.mrf.mxu0
        %2046 = vdwg.mxu0
        %v2047 = vadd.f32 %v471, %v2039
        %v2048 = vadd.f32 %v472, %v2044
        %v2049 = vsel %vm484, %v2047, 0.0
        %2050 = vadd.xlane.f32.xlu0 %v2049
        %v2051 = vpop.xlane.xlu0 %2050
        %v2052 = vsel %vm484, %v2048, 0.0
        %2053 = vadd.xlane.f32.xlu0 %v2052
        %v2054 = vpop.xlane.xlu0 %2053
        %v2055 = vrcp.pop 32.0
        %v2056 = vmul.f32 %v2051, %v2055
        %v2057 = vmul.f32 %v2054, %v2055
        %v2058 = vsub.f32 %v2047, %v2056
        %v2059 = vsub.f32 %v2048, %v2057
        %v2060 = vmul.f32 %v2058, %v2058
        %v2061 = vmul.f32 %v2059, %v2059
        %v2062 = vsel %vm484, %v2060, 0.0
        %2063 = vadd.xlane.f32.xlu0 %v2062
        %v2064 = vpop.xlane.xlu0 %2063
        %v2065 = vsel %vm484, %v2061, 0.0
        %2066 = vadd.xlane.f32.xlu0 %v2065
        %v2067 = vpop.xlane.xlu0 %2066
        %v2068 = vmul.f32 %v2064, %v2055
        %v2069 = vmul.f32 %v2067, %v2055
        %v2070 = vadd.f32 %v2068, 1e-05
        %v2071 = vadd.f32 %v2069, 1e-05
        %v2072 = vrsqrt.pop %v2070
        %v2073 = vrsqrt.pop %v2071
        %v2074 = vmul.f32 %v2058, %v2072
        %v2075 = vmul.f32 %v2059, %v2073
        %v2076 = vlaneseq
        %v2077 = vshrl.u32 %v2076, 7
        %v2078 = vsub.s32 2, %v2077
        %v2079 = vrot.slane %v1957, %v2078
        %v2080 = vmul.f32 %v2074, %v2079
        %v2081 = vmul.f32 %v2075, %v2079
        %v2082 = vlaneseq
        %v2083 = vshrl.u32 %v2082, 7
        %v2084 = vsub.s32 3, %v2083
        %v2085 = vrot.slane %v1957, %v2084
        %v2086 = vadd.f32 %v2080, %v2085
        %v2087 = vadd.f32 %v2081, %v2085
        %v2088 = vld [vmem:[%s449] sm:$0xff]
        %v2089 = vld [vmem:[%s449 + $0x8] sm:$0xff]
        %v2090 = vld [vmem:[%s449 + $0x10] sm:$0xff]
        %v2091 = vld [vmem:[%s449 + $0x18] sm:$0xff]
        %v2092 = vld [vmem:[%s452] sm:$0x1]
        %v2094 = vlaneseq
        %v2095 = vshrl.u32 %v2094, 7
        %v2096 = vsub.s32 0, %v2095
        %v2097 = vrot.slane %v2092, %v2096
        %v2100 = vsel %vm484, %v2086, 0
        %v2103 = vsel %vm484, %v2087, 0
        %2105 = vmatprep.subr.mxu0 0.0
        %2106 = vmatpush1.msra.mxu0 0.0
        %2107 = vmatprep.subr.mxu0 0.0
        %2108 = vmatpush1.msra.mxu0 0.0
        %2109 = vmatprep.subr.mxu0 0.0
        %2110 = vmatpush1.msra.mxu0 0.0
        %2111 = vmatprep.subr.mxu0 0.0
        %2112 = vmatpush1.msra.mxu0 0.0
        %2113 = vmatprep.subr.mxu0 0.0
        %2114 = vmatpush1.msra.mxu0 0.0
        %2115 = vmatprep.subr.mxu0 0.0
        %2116 = vmatpush1.msra.mxu0 0.0
        %2117 = vmatprep.subr.mxu0 0.0
        %2118 = vmatpush1.msra.mxu0 0.0
        %2119 = vmatprep.subr.mxu0 0.0
        %2120 = vmatpush1.msra.mxu0 0.0
        %2121 = vmatprep.subr.mxu0 0.0
        %2122 = vmatpush1.msra.mxu0 0.0
        %2123 = vmatprep.subr.mxu0 0.0
        %2124 = vmatpush1.msra.mxu0 0.0
        %2125 = vmatprep.subr.mxu0 0.0
        %2126 = vmatpush1.msra.mxu0 0.0
        %2127 = vmatprep.subr.mxu0 0.0
        %2128 = vmatpush1.msra.mxu0 0.0
        %2129 = vmatprep.subr.mxu0 0.0
        %2130 = vmatpush1.msra.mxu0 %v2091
        %2131 = vmatprep.subr.mxu0 0.0
        %2132 = vmatpush1.msra.mxu0 %v2090
        %2133 = vmatprep.subr.mxu0 0.0
        %2134 = vmatpush1.msra.mxu0 %v2089
        %2135 = vmatprep.subr.mxu0 0.0
        %2136 = vmatpush1.msra.mxu0 %v2088
        %2137 = vmatprep.subr.mxu0 0.0
        %2138 = vmatpush2.msra.mxu0 0.0
        %2139 = vmatprep.subr.mxu0 0.0
        %2140 = vmatpush2.msra.mxu0 0.0
        %2141 = vmatprep.subr.mxu0 0.0
        %2142 = vmatpush2.msra.mxu0 0.0
        %2143 = vmatprep.subr.mxu0 0.0
        %2144 = vmatpush2.msra.mxu0 0.0
        %2145 = vmatprep.subr.mxu0 0.0
        %2146 = vmatpush2.msra.mxu0 0.0
        %2147 = vmatprep.subr.mxu0 0.0
        %2148 = vmatpush2.msra.mxu0 0.0
        %2149 = vmatprep.subr.mxu0 0.0
        %2150 = vmatpush2.msra.mxu0 0.0
        %2151 = vmatprep.subr.mxu0 0.0
        %2152 = vmatpush2.msra.mxu0 0.0
        %2153 = vmatprep.subr.mxu0 0.0
        %2154 = vmatpush2.msra.mxu0 0.0
        %2155 = vmatprep.subr.mxu0 0.0
        %2156 = vmatpush2.msra.mxu0 0.0
        %2157 = vmatprep.subr.mxu0 0.0
        %2158 = vmatpush2.msra.mxu0 0.0
        %2159 = vmatprep.subr.mxu0 0.0
        %2160 = vmatpush2.msra.mxu0 0.0
        %2161 = vmatprep.subr.mxu0 0.0
        %2162 = vmatpush2.msra.mxu0 0.0
        %2163 = vmatprep.subr.mxu0 0.0
        %2164 = vmatpush2.msra.mxu0 0.0
        %2165 = vmatprep.subr.mxu0 0.0
        %2166 = vmatpush2.msra.mxu0 0.0
        %2167 = vmatprep.subr.mxu0 0.0
        %2168 = vmatpush2.msra.mxu0 0.0
        %2169 = vmatprep.mubr.f32.mxu0 0.0
        %2170 = vmatmul.mubr.f32.gmra.mxu0 %v2100
        %v2171 = vpop.f32.mrf.mxu0
        %v2172 = vadd.f32 %v2097, %v2171
        %v2173 = vpop.f32.mrf.mxu0
        %2174 = vmatprep.mubr.f32.mxu0 0.0
        %2175 = vmatmul.mubr.f32.gmra.mxu0 %v2103
        %v2176 = vpop.f32.mrf.mxu0
        %v2177 = vadd.f32 %v2097, %v2176
        %v2178 = vpop.f32.mrf.mxu0
        %2179 = vdwg.mxu0
        %v2180 = vmax.f32 %v2172, 0.0
        %v2181 = vmax.f32 %v2177, 0.0
        %v2182 = vld [vmem:[%s457] sm:$0xff]
        %v2183 = vld [vmem:[%s457 + $0x8] sm:$0xff]
        %v2184 = vld [vmem:[%s457 + $0x10] sm:$0xff]
        %v2185 = vld [vmem:[%s457 + $0x18] sm:$0xff]
        %v2186 = vld [vmem:[%s457 + $0x20] sm:$0xff]
        %v2187 = vld [vmem:[%s457 + $0x28] sm:$0xff]
        %v2188 = vld [vmem:[%s457 + $0x30] sm:$0xff]
        %v2189 = vld [vmem:[%s457 + $0x38] sm:$0xff]
        %v2190 = vlaneseq
        %v2191 = vshrl.u32 %v2190, 7
        %v2192 = vsub.s32 1, %v2191
        %v2193 = vrot.slane %v1957, %v2192
        %vm2194 = vcmask 523264
        %v2196 = vsel %vm2194, %v2180, 0
        %v2199 = vsel %vm2194, %v2181, 0
        %2201 = vmatprep.subr.mxu0 0.0
        %2202 = vmatpush1.msra.mxu0 0.0
        %2203 = vmatprep.subr.mxu0 0.0
        %2204 = vmatpush1.msra.mxu0 0.0
        %2205 = vmatprep.subr.mxu0 0.0
        %2206 = vmatpush1.msra.mxu0 0.0
        %2207 = vmatprep.subr.mxu0 0.0
        %2208 = vmatpush1.msra.mxu0 0.0
        %2209 = vmatprep.subr.mxu0 0.0
        %2210 = vmatpush1.msra.mxu0 0.0
        %2211 = vmatprep.subr.mxu0 0.0
        %2212 = vmatpush1.msra.mxu0 0.0
        %2213 = vmatprep.subr.mxu0 0.0
        %2214 = vmatpush1.msra.mxu0 0.0
        %2215 = vmatprep.subr.mxu0 0.0
        %2216 = vmatpush1.msra.mxu0 0.0
        %2217 = vmatprep.subr.mxu0 0.0
        %2218 = vmatpush1.msra.mxu0 %v2189
        %2219 = vmatprep.subr.mxu0 0.0
        %2220 = vmatpush1.msra.mxu0 %v2188
        %2221 = vmatprep.subr.mxu0 0.0
        %2222 = vmatpush1.msra.mxu0 %v2187
        %2223 = vmatprep.subr.mxu0 0.0
        %2224 = vmatpush1.msra.mxu0 %v2186
        %2225 = vmatprep.subr.mxu0 0.0
        %2226 = vmatpush1.msra.mxu0 %v2185
        %2227 = vmatprep.subr.mxu0 0.0
        %2228 = vmatpush1.msra.mxu0 %v2184
        %2229 = vmatprep.subr.mxu0 0.0
        %2230 = vmatpush1.msra.mxu0 %v2183
        %2231 = vmatprep.subr.mxu0 0.0
        %2232 = vmatpush1.msra.mxu0 %v2182
        %2233 = vmatprep.subr.mxu0 0.0
        %2234 = vmatpush2.msra.mxu0 0.0
        %2235 = vmatprep.subr.mxu0 0.0
        %2236 = vmatpush2.msra.mxu0 0.0
        %2237 = vmatprep.subr.mxu0 0.0
        %2238 = vmatpush2.msra.mxu0 0.0
        %2239 = vmatprep.subr.mxu0 0.0
        %2240 = vmatpush2.msra.mxu0 0.0
        %2241 = vmatprep.subr.mxu0 0.0
        %2242 = vmatpush2.msra.mxu0 0.0
        %2243 = vmatprep.subr.mxu0 0.0
        %2244 = vmatpush2.msra.mxu0 0.0
        %2245 = vmatprep.subr.mxu0 0.0
        %2246 = vmatpush2.msra.mxu0 0.0
        %2247 = vmatprep.subr.mxu0 0.0
        %2248 = vmatpush2.msra.mxu0 0.0
        %2249 = vmatprep.subr.mxu0 0.0
        %2250 = vmatpush2.msra.mxu0 0.0
        %2251 = vmatprep.subr.mxu0 0.0
        %2252 = vmatpush2.msra.mxu0 0.0
        %2253 = vmatprep.subr.mxu0 0.0
        %2254 = vmatpush2.msra.mxu0 0.0
        %2255 = vmatprep.subr.mxu0 0.0
        %2256 = vmatpush2.msra.mxu0 0.0
        %2257 = vmatprep.subr.mxu0 0.0
        %2258 = vmatpush2.msra.mxu0 0.0
        %2259 = vmatprep.subr.mxu0 0.0
        %2260 = vmatpush2.msra.mxu0 0.0
        %2261 = vmatprep.subr.mxu0 0.0
        %2262 = vmatpush2.msra.mxu0 0.0
        %2263 = vmatprep.subr.mxu0 0.0
        %2264 = vmatpush2.msra.mxu0 0.0
        %2265 = vmatprep.mubr.f32.mxu0 0.0
        %2266 = vmatmul.mubr.f32.gmra.mxu0 %v2196
        %v2267 = vpop.f32.mrf.mxu0
        %v2268 = vadd.f32 %v2193, %v2267
        %v2269 = vpop.f32.mrf.mxu0
        %2270 = vmatprep.mubr.f32.mxu0 0.0
        %2271 = vmatmul.mubr.f32.gmra.mxu0 %v2199
        %v2272 = vpop.f32.mrf.mxu0
        %v2273 = vadd.f32 %v2193, %v2272
        %v2274 = vpop.f32.mrf.mxu0
        %2275 = vdwg.mxu0
        %v2276 = vadd.f32 %v2086, %v2268
        %v2277 = vadd.f32 %v2087, %v2273
        %v2278 = vsel %vm484, %v2276, 0.0
        %2279 = vadd.xlane.f32.xlu0 %v2278
        %v2280 = vpop.xlane.xlu0 %2279
        %v2281 = vsel %vm484, %v2277, 0.0
        %2282 = vadd.xlane.f32.xlu0 %v2281
        %v2283 = vpop.xlane.xlu0 %2282
        %v2284 = vmul.f32 %v2280, %v2055
        %v2285 = vmul.f32 %v2283, %v2055
        %v2286 = vsub.f32 %v2276, %v2284
        %v2287 = vsub.f32 %v2277, %v2285
        %v2288 = vmul.f32 %v2286, %v2286
        %v2289 = vmul.f32 %v2287, %v2287
        %v2290 = vsel %vm484, %v2288, 0.0
        %2291 = vadd.xlane.f32.xlu0 %v2290
        %v2292 = vpop.xlane.xlu0 %2291
        %v2293 = vsel %vm484, %v2289, 0.0
        %2294 = vadd.xlane.f32.xlu0 %v2293
        %v2295 = vpop.xlane.xlu0 %2294
        %v2296 = vmul.f32 %v2292, %v2055
        %v2297 = vmul.f32 %v2295, %v2055
        %v2298 = vadd.f32 %v2296, 1e-05
        %v2299 = vadd.f32 %v2297, 1e-05
        %v2300 = vrsqrt.pop %v2298
        %v2301 = vrsqrt.pop %v2299
        %v2302 = vmul.f32 %v2286, %v2300
        %v2303 = vmul.f32 %v2287, %v2301
        %v2304 = vlaneseq
        %v2305 = vshrl.u32 %v2304, 7
        %v2306 = vsub.s32 4, %v2305
        %v2307 = vrot.slane %v1957, %v2306
        %v2308 = vmul.f32 %v2302, %v2307
        %v2309 = vmul.f32 %v2303, %v2307
        %v2310 = vlaneseq
        %v2311 = vshrl.u32 %v2310, 7
        %v2312 = vsub.s32 5, %v2311
        %v2313 = vrot.slane %v1957, %v2312
        %v2314 = vadd.f32 %v2308, %v2313
        %v2315 = vadd.f32 %v2309, %v2313
        %2316 = vst.msk [vmem:[#allocation2] sm:$0xff] %vm484, %v2314
        %2317 = vst.msk [vmem:[#allocation2 + $0x8] sm:$0xff] %vm484, %v2315
        %p2318 = scmp.eq.s32.totalorder %s26, 1
        // Predicated region
        $region61: #{tpu_custom_call.1} parent=55 // pred_check
          %p2319 = pneg %p2318
        $region62: #{tpu_custom_call.1} parent=55 // pred_check_branch
          %2321 = sbr.rel (%p2319) target = $region64
        $region63: #{tpu_custom_call.1} parent=55 // pred_region
          %v2322 = vld [vmem:[%s8] sm:$0x1]
          %v2323 = vld [vmem:[%s8 + $0x1] sm:$0x1]
          %v2324 = vsel %vm484, %v2314, 0.0
          %2325 = vadd.xlane.f32.xlu0 %v2324
          %v2326 = vpop.xlane.xlu0 %2325
          %v2327 = vsel %vm484, %v2315, 0.0
          %2328 = vadd.xlane.f32.xlu0 %v2327
          %v2329 = vpop.xlane.xlu0 %2328
          %v2330 = vmul.f32 %v2326, %v2055
          %v2331 = vmul.f32 %v2329, %v2055
          %v2332 = vsub.f32 %v2314, %v2330
          %v2333 = vsub.f32 %v2315, %v2331
          %v2334 = vmul.f32 %v2332, %v2332
          %v2335 = vmul.f32 %v2333, %v2333
          %v2336 = vsel %vm484, %v2334, 0.0
          %2337 = vadd.xlane.f32.xlu0 %v2336
          %v2338 = vpop.xlane.xlu0 %2337
          %v2339 = vsel %vm484, %v2335, 0.0
          %2340 = vadd.xlane.f32.xlu0 %v2339
          %v2341 = vpop.xlane.xlu0 %2340
          %v2342 = vmul.f32 %v2338, %v2055
          %v2343 = vmul.f32 %v2341, %v2055
          %v2344 = vadd.f32 %v2342, 1e-05
          %v2345 = vadd.f32 %v2343, 1e-05
          %v2346 = vrsqrt.pop %v2344
          %v2347 = vrsqrt.pop %v2345
          %v2348 = vmul.f32 %v2332, %v2346
          %v2349 = vmul.f32 %v2333, %v2347
          %v2350 = vlaneseq
          %v2351 = vshrl.u32 %v2350, 7
          %v2352 = vsub.s32 0, %v2351
          %v2353 = vrot.slane %v2322, %v2352
          %v2354 = vmul.f32 %v2348, %v2353
          %v2355 = vmul.f32 %v2349, %v2353
          %v2356 = vlaneseq
          %v2357 = vshrl.u32 %v2356, 7
          %v2358 = vsub.s32 0, %v2357
          %v2359 = vrot.slane %v2323, %v2358
          %v2360 = vadd.f32 %v2354, %v2359
          %v2361 = vadd.f32 %v2355, %v2359
          %2362 = vst.msk [vmem:[#allocation3] sm:$0xff] %vm484, %v2360
          %2363 = vst.msk [vmem:[#allocation3 + $0x8] sm:$0xff] %vm484, %v2361
        $region64: #{tpu_custom_call.1} parent=55 // pred_fallthru
          _
        %s2364 = sand.u32 %s279, 1
        %s2365 = scalar_lea.sflag [#allocation6], %s2364
        %s2366 = sand.u32 %s279, 1
        %s2367 = smul.addr %s2366, 64
        %s2368 = scalar_lea.vmem [#allocation5], %s2367
        // Predicated region
        $region65: #{tpu_custom_call.1} parent=55 // pred_check
          %p2369 = pneg %p263
        $region66: #{tpu_custom_call.1} parent=55 // pred_check_branch
          %2371 = sbr.rel (%p2369) target = $region68
        $region67: #{tpu_custom_call.1} parent=55 // pred_region
          %s2373 = ssub.s32 256, 256
          %2374 = vsyncadd [#allocation4], %s2373
          %s2375 = sshll.u32 [#allocation3], 4
          %s2376 = int_to_ptr.vmem [resolvable:$true] %s2375
          %2381 = dma.vmem_to_hbm [thread:$0]  %s2376, 256, %s9, [#allocation4], 128, 128, 8
        $region68: #{tpu_custom_call.1} parent=55 // pred_fallthru
          _
        // Predicated region
        $region69: #{tpu_custom_call.1} parent=55 // pred_check
          %p2382 = pneg %p289
        $region70: #{tpu_custom_call.1} parent=55 // pred_check_branch
          %2384 = sbr.rel (%p2382) target = $region72
        $region71: #{tpu_custom_call.1} parent=55 // pred_region
          %s2386 = ssub.s32 1024, 1024
          %2387 = vsyncadd %s2365, %s2386
          %s2388 = smul.addr %s26, 8
          %s2389 = smul.addr %s2388, 128
          %s2390 = scalar_lea.hbm %s10, %s2389
          %s2391 = sshll.u32 %s2368, 4
          %s2392 = int_to_ptr.vmem [resolvable:$true] %s2391
          %2397 = dma.vmem_to_hbm [thread:$0]  %s2392, 1024, %s2390, %s2365, 128, 128, 8
        $region72: #{tpu_custom_call.1} parent=55 // pred_fallthru
          _
        // Predicated region
        $region73: #{tpu_custom_call.1} parent=55 // pred_check
          %p2398 = pneg %p263
        $region74: #{tpu_custom_call.1} parent=55 // pred_check_branch
          %2400 = sbr.rel (%p2398) target = $region76
        $region75: #{tpu_custom_call.1} parent=55 // pred_region
          %2401 = dma.done [#allocation4], 256
        $region76: #{tpu_custom_call.1} parent=55 // pred_fallthru
          _
      $region56: #{tpu_custom_call.1} parent=5 // pred_fallthru
        _
      %p2402 = scmp.le.s32.totalorder 2, %s21
      // Predicated region
      $region77: #{tpu_custom_call.1} parent=5 // pred_check
        %p2403 = pneg %p2402
      $region78: #{tpu_custom_call.1} parent=5 // pred_check_branch
        %2405 = sbr.rel (%p2403) target = $region80
      $region79: #{tpu_custom_call.1} parent=5 // pred_region
        %s2406 = ssub.s32 %s21, 2
        // Predicated region
        $region81: #{tpu_custom_call.1} parent=79 // pred_check
          %p2407 = pneg %p295
        $region82: #{tpu_custom_call.1} parent=79 // pred_check_branch
          %2409 = sbr.rel (%p2407) target = $region84
        $region83: #{tpu_custom_call.1} parent=79 // pred_region
          %s2410 = sand.u32 %s280, 1
          %s2411 = scalar_lea.sflag [#allocation6], %s2410
          %s2412 = sand.u32 %s280, 1
          %s2413 = smul.addr %s2412, 64
          %s2414 = scalar_lea.vmem [#allocation5], %s2413
          %2415 = dma.done %s2411, 1024
        $region84: #{tpu_custom_call.1} parent=79 // pred_fallthru
          _
      $region80: #{tpu_custom_call.1} parent=5 // pred_fallthru
        _
    $region6: #{tpu_custom_call.1} parent=1 // loop_footer
      %s25 = sadd.s32 1, %s21
    $region7: #{tpu_custom_call.1} parent=1 // loop_footer_branch
      %20 = sbr.rel target = $region3
    $region8: #{tpu_custom_call.1} parent=1 // loop_exit
      _
    %2416 = vsyncpa [#allocation4], 1
    %s2417 = scalar_lea.sflag [#allocation4], 1
    %2418 = vsyncpa %s2417, 1
    %2419 = vsyncpa [#allocation6], 1
    %s2420 = scalar_lea.sflag [#allocation6], 1
    %2421 = vsyncpa %s2420, 1

</llo_original>
